<compile_context>
chip_gen: v5e
topology: v5e:2x2
jax: 0.10.0
libtpu: 0.0.40
codegen_flags: <defaults>
</compile_context>

<pallas_src>
import jax
import jax.numpy as jnp
import numpy as np
from jax.experimental import pallas as pl
from jax.experimental.pallas import tpu as pltpu


def mlp_probe_kernel(x_ref, w1_ref, b1_ref, w2_ref, b2_ref, w3_ref, b3_ref, o_ref):
    # Layer 1: Linear (bf16 MXU, f32 acc) + ReLU.   Dropout = identity (eval).
    h = jnp.dot(x_ref[...], w1_ref[...], preferred_element_type=jnp.float32)
    h = jnp.maximum(h + b1_ref[...], 0.0)
    # Layer 2: Linear (bf16 MXU, f32 acc) + ReLU.   Dropout = identity (eval).
    h = jnp.dot(h.astype(jnp.bfloat16), w2_ref[...], preferred_element_type=jnp.float32)
    h = jnp.maximum(h + b2_ref[...], 0.0)
    # Output layer (out_dim == 1): VPU multiply + cross-lane reduction instead
    # of an MXU matmul with a single active column.
    out = jnp.sum(h * w3_ref[...], axis=-1, keepdims=True) + b3_ref[0, 0]
    o_ref[...] = out.astype(o_ref.dtype)


def mlp_probe_forward(x, params, *, tile_b=256):
    """x: (B, input_dim) f32. params: w_i stored as (in, out), b_i as (1, out), f32.

    tile_b: batch tile. Use a multiple of 256 on v6e/v7x, 128 on v5e; re-derive
    for v7x's 64 MiB VMEM if hidden dims grow.
    """
    w1, b1 = params["w1"], params["b1"]
    w2, b2 = params["w2"], params["b2"]
    w3, b3 = params["w3"], params["b3"]

    B, in_dim = x.shape
    h1 = w1.shape[1]
    h2 = w2.shape[1]

    # Pad batch up to a whole number of tiles (padded rows are sliced off below).
    n_tiles = pl.cdiv(B, tile_b)
    b_pad = n_tiles * tile_b
    if b_pad != B:
        x = jnp.pad(x, ((0, b_pad - B), (0, 0)))

    # bf16 matmul operands (f32 accumulation happens inside the kernel).
    x_bf = x.astype(jnp.bfloat16)
    w1_bf = w1.astype(jnp.bfloat16)
    w2_bf = w2.astype(jnp.bfloat16)
    w3_row = w3.reshape(1, h2)  # (h2, 1) -> (1, h2) row for the VPU reduction (f32)

    out = pl.pallas_call(
        mlp_probe_kernel,
        out_shape=jax.ShapeDtypeStruct((b_pad, 1), jnp.float32),
        grid=(n_tiles,),
        in_specs=[
            pl.BlockSpec((tile_b, in_dim), lambda i: (i, 0)),   # x: tiled over batch
            pl.BlockSpec((in_dim, h1), lambda i: (0, 0)),       # w1: VMEM-resident
            pl.BlockSpec((1, h1), lambda i: (0, 0)),            # b1
            pl.BlockSpec((h1, h2), lambda i: (0, 0)),           # w2
            pl.BlockSpec((1, h2), lambda i: (0, 0)),            # b2
            pl.BlockSpec((1, h2), lambda i: (0, 0)),            # w3 as a row
            pl.BlockSpec(memory_space=pltpu.MemorySpace.SMEM),  # b3 scalar (1,1)
        ],
        out_specs=pl.BlockSpec((tile_b, 1), lambda i: (i, 0)),
        compiler_params=pltpu.CompilerParams(
            dimension_semantics=("parallel",),
        ),
    )(x_bf, w1_bf, b1, w2_bf, b2, w3_row, b3)
    return out[:B]


def init_params(key, input_dim, hidden_dims, output_dim):
    """Deterministic init mimicking nn.Linear's uniform(-1/sqrt(fan_in), ...)."""
    dims = [input_dim] + list(hidden_dims) + [output_dim]
    params = {}
    for i, (fan_in, fan_out) in enumerate(zip(dims[:-1], dims[1:]), start=1):
        key, kw, kb = jax.random.split(key, 3)
        bound = 1.0 / np.sqrt(fan_in)
        # weight stored as (in_dim, out_dim) for the kernel
        params[f"w{i}"] = jax.random.uniform(
            kw, (fan_in, fan_out), jnp.float32, minval=-bound, maxval=bound)
        params[f"b{i}"] = jax.random.uniform(
            kb, (1, fan_out), jnp.float32, minval=-bound, maxval=bound)
    return params


def mlp_probe_reference(x, params):
    """Reference with the same bf16-operand / f32-accumulate numerics."""
    h = jnp.dot(x.astype(jnp.bfloat16), params["w1"].astype(jnp.bfloat16),
                preferred_element_type=jnp.float32)
    h = jnp.maximum(h + params["b1"], 0.0)
    h = jnp.dot(h.astype(jnp.bfloat16), params["w2"].astype(jnp.bfloat16),
                preferred_element_type=jnp.float32)
    h = jnp.maximum(h + params["b2"], 0.0)
    return jnp.dot(h, params["w3"], preferred_element_type=jnp.float32) + params["b3"]


if __name__ == "__main__":
    INPUT_DIM = 128
    HIDDEN_DIMS = [512, 256]   # module defaults
    OUTPUT_DIM = 1
    BATCH = 200                # not a multiple of the tile -> exercises padding
    TILE_B = 128

    key = jax.random.PRNGKey(0)
    key, kx = jax.random.split(key)
    x = jax.random.normal(kx, (BATCH, INPUT_DIM), jnp.float32)
    params = init_params(key, INPUT_DIM, HIDDEN_DIMS, OUTPUT_DIM)

    out = mlp_probe_forward(x, params, tile_b=TILE_B)
    out = jax.block_until_ready(out)
    assert out.shape == (BATCH, OUTPUT_DIM)

    ref = mlp_probe_reference(x, params)
    np.testing.assert_allclose(np.asarray(out), np.asarray(ref), rtol=2e-3, atol=2e-3)

    print("KERNEL_OK")
</pallas_src>

<mosaic_0001>
module attributes {stable_mosaic.version = 11 : i64} {
  func.func @mlp_probe_kernel(%arg0: i32, %arg1: memref<128x128xbf16, #tpu.memory_space<vmem>>, %arg2: memref<128x512xbf16, #tpu.memory_space<vmem>>, %arg3: memref<1x512xf32, #tpu.memory_space<vmem>>, %arg4: memref<512x256xbf16, #tpu.memory_space<vmem>>, %arg5: memref<1x256xf32, #tpu.memory_space<vmem>>, %arg6: memref<1x256xf32, #tpu.memory_space<vmem>>, %arg7: memref<1x1xf32, #tpu.memory_space<smem>>, %arg8: memref<128x1xf32, #tpu.memory_space<vmem>>) attributes {dimension_semantics = [#tpu.dimension_semantics<parallel>], iteration_bounds = array<i64: 2>, scalar_prefetch = 0 : i64, scratch_operands = 0 : i64, tpu.core_type = #tpu.core_type<tc>, window_params = [{transform_indices = @transform_0, window_bounds = array<i64: 128, 128>}, {pipeline_mode = #tpu.pipeline_mode<synchronous>, transform_indices = @transform_1, window_bounds = array<i64: 128, 512>}, {pipeline_mode = #tpu.pipeline_mode<synchronous>, transform_indices = @transform_2, window_bounds = array<i64: 1, 512>}, {pipeline_mode = #tpu.pipeline_mode<synchronous>, transform_indices = @transform_3, window_bounds = array<i64: 512, 256>}, {pipeline_mode = #tpu.pipeline_mode<synchronous>, transform_indices = @transform_4, window_bounds = array<i64: 1, 256>}, {pipeline_mode = #tpu.pipeline_mode<synchronous>, transform_indices = @transform_5, window_bounds = array<i64: 1, 256>}, {transform_indices = @transform_6, window_bounds = array<i64: 1, 1>}, {transform_indices = @transform_7, window_bounds = array<i64: 128, 1>}]} {
    %c0 = arith.constant 0 : index
    %c0_0 = arith.constant 0 : index
    %0 = vector.load %arg1[%c0, %c0_0] : memref<128x128xbf16, #tpu.memory_space<vmem>>, vector<128x128xbf16>
    %c0_1 = arith.constant 0 : index
    %c0_2 = arith.constant 0 : index
    %1 = vector.load %arg2[%c0_1, %c0_2] : memref<128x512xbf16, #tpu.memory_space<vmem>>, vector<128x512xbf16>
    %cst = arith.constant dense<0.000000e+00> : vector<128x512xf32>
    %2 = tpu.matmul %0, %1, %cst {dimension_numbers = #tpu.dot_dimension_numbers<[1], [0], [0], [1], [0, 0, 1, 1], [], []>} : vector<128x128xbf16>, vector<128x512xbf16>, vector<128x512xf32> -> vector<128x512xf32>
    %c0_3 = arith.constant 0 : index
    %c0_4 = arith.constant 0 : index
    %3 = vector.load %arg3[%c0_3, %c0_4] : memref<1x512xf32, #tpu.memory_space<vmem>>, vector<1x512xf32>
    %4 = vector.broadcast %3 : vector<1x512xf32> to vector<128x512xf32>
    %5 = arith.addf %2, %4 : vector<128x512xf32>
    %cst_5 = arith.constant 0.000000e+00 : f32
    %6 = vector.broadcast %cst_5 : f32 to vector<128x512xf32>
    %7 = arith.maximumf %5, %6 : vector<128x512xf32>
    %8 = arith.truncf %7 : vector<128x512xf32> to vector<128x512xbf16>
    %c0_6 = arith.constant 0 : index
    %c0_7 = arith.constant 0 : index
    %9 = vector.load %arg4[%c0_6, %c0_7] : memref<512x256xbf16, #tpu.memory_space<vmem>>, vector<512x256xbf16>
    %cst_8 = arith.constant dense<0.000000e+00> : vector<128x256xf32>
    %10 = tpu.matmul %8, %9, %cst_8 {dimension_numbers = #tpu.dot_dimension_numbers<[1], [0], [0], [1], [0, 0, 1, 1], [], []>} : vector<128x512xbf16>, vector<512x256xbf16>, vector<128x256xf32> -> vector<128x256xf32>
    %c0_9 = arith.constant 0 : index
    %c0_10 = arith.constant 0 : index
    %11 = vector.load %arg5[%c0_9, %c0_10] : memref<1x256xf32, #tpu.memory_space<vmem>>, vector<1x256xf32>
    %12 = vector.broadcast %11 : vector<1x256xf32> to vector<128x256xf32>
    %13 = arith.addf %10, %12 : vector<128x256xf32>
    %cst_11 = arith.constant 0.000000e+00 : f32
    %14 = vector.broadcast %cst_11 : f32 to vector<128x256xf32>
    %15 = arith.maximumf %13, %14 : vector<128x256xf32>
    %c0_12 = arith.constant 0 : index
    %c0_13 = arith.constant 0 : index
    %16 = vector.load %arg6[%c0_12, %c0_13] : memref<1x256xf32, #tpu.memory_space<vmem>>, vector<1x256xf32>
    %17 = vector.broadcast %16 : vector<1x256xf32> to vector<128x256xf32>
    %18 = arith.mulf %15, %17 : vector<128x256xf32>
    %cst_14 = arith.constant dense<0.000000e+00> : vector<128xf32>
    %19 = vector.multi_reduction <add>, %18, %cst_14 [1] : vector<128x256xf32> to vector<128xf32>
    %20 = vector.shape_cast %19 : vector<128xf32> to vector<128x1xf32>
    %c0_15 = arith.constant 0 : index
    %c0_16 = arith.constant 0 : index
    %21 = memref.load %arg7[%c0_15, %c0_16] : memref<1x1xf32, #tpu.memory_space<smem>>
    %22 = vector.broadcast %21 : f32 to vector<128x1xf32>
    %23 = arith.addf %20, %22 : vector<128x1xf32>
    %c0_17 = arith.constant 0 : index
    %c0_18 = arith.constant 0 : index
    %24 = vector.load %arg8[%c0_17, %c0_18] : memref<128x1xf32, #tpu.memory_space<vmem>>, vector<128x1xf32>
    tpu.vector_store %arg8[%c0_17, %c0_18], %23 {strides = array<i32>} : memref<128x1xf32, #tpu.memory_space<vmem>>, vector<128x1xf32>,
    return
  }
  func.func @transform_0(%arg0: i32) -> (i32, i32) {
    %c0_i32 = arith.constant 0 : i32
    %c0_i32_0 = arith.constant 0 : i32
    return %arg0, %c0_i32 : i32, i32
  }
  func.func @transform_1(%arg0: i32) -> (i32, i32) {
    %c0_i32 = arith.constant 0 : i32
    %c0_i32_0 = arith.constant 0 : i32
    %c0_i32_1 = arith.constant 0 : i32
    return %c0_i32, %c0_i32_0 : i32, i32
  }
  func.func @transform_2(%arg0: i32) -> (i32, i32) {
    %c0_i32 = arith.constant 0 : i32
    %c0_i32_0 = arith.constant 0 : i32
    %c0_i32_1 = arith.constant 0 : i32
    return %c0_i32, %c0_i32_0 : i32, i32
  }
  func.func @transform_3(%arg0: i32) -> (i32, i32) {
    %c0_i32 = arith.constant 0 : i32
    %c0_i32_0 = arith.constant 0 : i32
    %c0_i32_1 = arith.constant 0 : i32
    return %c0_i32, %c0_i32_0 : i32, i32
  }
  func.func @transform_4(%arg0: i32) -> (i32, i32) {
    %c0_i32 = arith.constant 0 : i32
    %c0_i32_0 = arith.constant 0 : i32
    %c0_i32_1 = arith.constant 0 : i32
    return %c0_i32, %c0_i32_0 : i32, i32
  }
  func.func @transform_5(%arg0: i32) -> (i32, i32) {
    %c0_i32 = arith.constant 0 : i32
    %c0_i32_0 = arith.constant 0 : i32
    %c0_i32_1 = arith.constant 0 : i32
    return %c0_i32, %c0_i32_0 : i32, i32
  }
  func.func @transform_6(%arg0: i32) -> (i32, i32) {
    %c0_i32 = arith.constant 0 : i32
    %c0_i32_0 = arith.constant 0 : i32
    %c0_i32_1 = arith.constant 0 : i32
    return %c0_i32, %c0_i32_0 : i32, i32
  }
  func.func @transform_7(%arg0: i32) -> (i32, i32) {
    %c0_i32 = arith.constant 0 : i32
    %c0_i32_0 = arith.constant 0 : i32
    return %arg0, %c0_i32 : i32, i32
  }
}

</mosaic_0001>

<llo_original>
// kernel: tpu_custom_call.1
$region0: #{tpu_custom_call.1}
  #allocation0 [shape = 'u32[]', space=smem, size = 0x4, offset = 0x4, fixed_abs, tag = 'smem constant byte address 0x4 - core index']
  #allocation1 [shape = 'u32[72,128]{1,0:T(1,128)}', space=vmem, size = 0x9000, scoped, tag = 'internal scratch']
  #allocation2 [shape = 'f32[1,1]{1,0:T(1,128)S(6)}', space=smem, size = 0x200, scoped, tag = 'scoped memory for tpu_custom_call.1']
  %s0 = inlined_call_operand.hbm [shape: bf16[256,128], index: 0, kind: input, shape index: {}]
  %s1 = inlined_call_operand.hbm [shape: bf16[128,512], index: 1, kind: input, shape index: {}]
  %s2 = inlined_call_operand.hbm [shape: f32[1,512], index: 2, kind: input, shape index: {}]
  %s3 = inlined_call_operand.hbm [shape: bf16[512,256], index: 3, kind: input, shape index: {}]
  %s4 = inlined_call_operand.vmem [shape: f32[1,256], index: 4, kind: input, shape index: {}]
  %s5 = inlined_call_operand.vmem [shape: f32[1,256], index: 5, kind: input, shape index: {}]
  %s6 = inlined_call_operand.<no memory space> [shape: f32[1,1], index: 6, kind: input, shape index: {}]
  %s7 = inlined_call_operand.vmem [shape: f32[256,1], index: 7, kind: output, shape index: {}]
  %s8 = sld [smem:[#allocation0]]
  $region77: #{tpu_custom_call.1} parent=0
    _
  %s10 = ssub.s32 1, %s8
  %s11 = scalar_select 0, %s10, %s8
  %12 = sst [smem:[#allocation2]] %s6
  $region1: #{tpu_custom_call.1} parent=0
    #allocation3 [shape = 'u8[65536]{0}', space=vmem, size = 0x10000, scoped, tag = 'input window, operand 0']
    #allocation4 [shape = 's32[2]{0}', space=sflag, size = 0x8, scoped, tag = 'scoped memory for tpu_custom_call.1']
    #allocation5 [shape = 'u8[131072]{0}', space=vmem, size = 0x20000, scoped, tag = 'input window, operand 1, single buffered']
    #allocation6 [shape = 's32[1]{0}', space=sflag, size = 0x4, scoped, tag = 'scoped memory for tpu_custom_call.1']
    #allocation7 [shape = 'u8[2048]{0}', space=vmem, size = 0x800, scoped, tag = 'input window, operand 2, single buffered']
    #allocation8 [shape = 'u8[262144]{0}', space=vmem, size = 0x40000, scoped, tag = 'input window, operand 3, single buffered']
    #allocation9 [shape = 's32[1]{0}', space=sflag, size = 0x4, scoped, tag = 'scoped memory for tpu_custom_call.1']
    %13 = vsyncpa [#allocation4], 0
    %s14 = scalar_lea.sflag [#allocation4], 1
    %15 = vsyncpa %s14, 0
    %16 = vsyncpa [#allocation6], 0
    %17 = vsyncpa [#allocation9], 0
    loop: start=0, step=1, limit=4
    $region2: #{tpu_custom_call.1} parent=1 // loop_pre_header
      _
    $region3: #{tpu_custom_call.1} parent=1 // loop_header
      %s19 = sphi 0, %s23
      %p20 = scmp.ge.s32.totalorder %s19, 4
      %s29 = sphi 0, %s31
      %s32 = sphi 0, %s29
      %s33 = sphi 0, %s32
      %s49 = sphi 0, %s33
      %s53 = sphi 0, %s53
      %s55 = sphi 0, %s53
      %s56 = sphi 0, %s55
      %s70 = sphi 0, %s56
      %s74 = sphi 0, %s74
      %s76 = sphi 0, %s74
      %s77 = sphi 0, %s76
      %s91 = sphi 0, %s77
      %s95 = sphi 0, %s95
      %s97 = sphi 0, %s95
      %s98 = sphi 0, %s97
      %s112 = sphi 0, %s98
      %s116 = sphi 0, %s116
      %s118 = sphi 0, %s116
      %s119 = sphi 0, %s118
      %s133 = sphi 0, %s119
      %s137 = sphi 0, %s137
      %s139 = sphi 0, %s137
      %s140 = sphi 0, %s139
      %s154 = sphi 0, %s140
      %s158 = sphi 0, %s158
      %s160 = sphi 0, %s158
      %s161 = sphi 0, %s160
      %s175 = sphi 0, %s161
      %s181 = sphi 0, %s183
      %s184 = sphi 0, %s181
      %s185 = sphi 0, %s184
      %s201 = sphi 0, %s185
    $region4: #{tpu_custom_call.1} parent=1 // loop_header_branch
      %22 = sbr.rel (%p20) target = $region8
    $region5: #{tpu_custom_call.1} parent=1 // loop_body
      %s24 = ssub.s32 %s19, 1
      %s25 = ssub.s32 %s19, 2
      %s26 = sadd.s32 %s19, 1
      %s27 = ssub.s32 %s19, %s26
      %p28 = scmp.eq.s32.totalorder %s27, 0
      %s30 = sadd.s32 %s29, 1
      %s31 = scalar_select %p28, %s29, %s30
      %p34 = pneg %p28
      %p35 = scmp.eq.s32.totalorder %s19, 1
      %p36 = por %p34, %p35
      %p37 = scmp.ne.s32.totalorder %s29, %s32
      %p38 = scmp.eq.s32.totalorder %s19, 0
      %p39 = por %p37, %p38
      %p40 = scmp.ne.s32.totalorder %s29, %s32
      %p41 = scmp.eq.s32.totalorder %s24, 1
      %p42 = por %p40, %p41
      %p43 = scmp.ne.s32.totalorder %s32, %s33
      %p44 = scmp.eq.s32.totalorder %s24, 0
      %p45 = por %p43, %p44
      %p46 = scmp.ne.s32.totalorder %s32, %s33
      %p47 = scmp.eq.s32.totalorder %s25, 1
      %p48 = por %p46, %p47
      %p50 = scmp.ne.s32.totalorder %s33, %s49
      %p51 = scmp.eq.s32.totalorder %s25, 0
      %p52 = por %p50, %p51
      %s54 = sadd.s32 %s53, 1
      %p57 = scmp.eq.s32.totalorder %s19, 1
      %p58 = scmp.ne.s32.totalorder %s53, %s55
      %p59 = scmp.eq.s32.totalorder %s19, 0
      %p60 = por %p58, %p59
      %p61 = scmp.ne.s32.totalorder %s53, %s55
      %p62 = scmp.eq.s32.totalorder %s24, 1
      %p63 = por %p61, %p62
      %p64 = scmp.ne.s32.totalorder %s55, %s56
      %p65 = scmp.eq.s32.totalorder %s24, 0
      %p66 = por %p64, %p65
      %p67 = scmp.ne.s32.totalorder %s55, %s56
      %p68 = scmp.eq.s32.totalorder %s25, 1
      %p69 = por %p67, %p68
      %p71 = scmp.ne.s32.totalorder %s56, %s70
      %p72 = scmp.eq.s32.totalorder %s25, 0
      %p73 = por %p71, %p72
      %s75 = sadd.s32 %s74, 1
      %p78 = scmp.eq.s32.totalorder %s19, 1
      %p79 = scmp.ne.s32.totalorder %s74, %s76
      %p80 = scmp.eq.s32.totalorder %s19, 0
      %p81 = por %p79, %p80
      %p82 = scmp.ne.s32.totalorder %s74, %s76
      %p83 = scmp.eq.s32.totalorder %s24, 1
      %p84 = por %p82, %p83
      %p85 = scmp.ne.s32.totalorder %s76, %s77
      %p86 = scmp.eq.s32.totalorder %s24, 0
      %p87 = por %p85, %p86
      %p88 = scmp.ne.s32.totalorder %s76, %s77
      %p89 = scmp.eq.s32.totalorder %s25, 1
      %p90 = por %p88, %p89
      %p92 = scmp.ne.s32.totalorder %s77, %s91
      %p93 = scmp.eq.s32.totalorder %s25, 0
      %p94 = por %p92, %p93
      %s96 = sadd.s32 %s95, 1
      %p99 = scmp.eq.s32.totalorder %s19, 1
      %p100 = scmp.ne.s32.totalorder %s95, %s97
      %p101 = scmp.eq.s32.totalorder %s19, 0
      %p102 = por %p100, %p101
      %p103 = scmp.ne.s32.totalorder %s95, %s97
      %p104 = scmp.eq.s32.totalorder %s24, 1
      %p105 = por %p103, %p104
      %p106 = scmp.ne.s32.totalorder %s97, %s98
      %p107 = scmp.eq.s32.totalorder %s24, 0
      %p108 = por %p106, %p107
      %p109 = scmp.ne.s32.totalorder %s97, %s98
      %p110 = scmp.eq.s32.totalorder %s25, 1
      %p111 = por %p109, %p110
      %p113 = scmp.ne.s32.totalorder %s98, %s112
      %p114 = scmp.eq.s32.totalorder %s25, 0
      %p115 = por %p113, %p114
      %s117 = sadd.s32 %s116, 1
      %p120 = scmp.eq.s32.totalorder %s19, 1
      %p121 = scmp.ne.s32.totalorder %s116, %s118
      %p122 = scmp.eq.s32.totalorder %s19, 0
      %p123 = por %p121, %p122
      %p124 = scmp.ne.s32.totalorder %s116, %s118
      %p125 = scmp.eq.s32.totalorder %s24, 1
      %p126 = por %p124, %p125
      %p127 = scmp.ne.s32.totalorder %s118, %s119
      %p128 = scmp.eq.s32.totalorder %s24, 0
      %p129 = por %p127, %p128
      %p130 = scmp.ne.s32.totalorder %s118, %s119
      %p131 = scmp.eq.s32.totalorder %s25, 1
      %p132 = por %p130, %p131
      %p134 = scmp.ne.s32.totalorder %s119, %s133
      %p135 = scmp.eq.s32.totalorder %s25, 0
      %p136 = por %p134, %p135
      %s138 = sadd.s32 %s137, 1
      %p141 = scmp.eq.s32.totalorder %s19, 1
      %p142 = scmp.ne.s32.totalorder %s137, %s139
      %p143 = scmp.eq.s32.totalorder %s19, 0
      %p144 = por %p142, %p143
      %p145 = scmp.ne.s32.totalorder %s137, %s139
      %p146 = scmp.eq.s32.totalorder %s24, 1
      %p147 = por %p145, %p146
      %p148 = scmp.ne.s32.totalorder %s139, %s140
      %p149 = scmp.eq.s32.totalorder %s24, 0
      %p150 = por %p148, %p149
      %p151 = scmp.ne.s32.totalorder %s139, %s140
      %p152 = scmp.eq.s32.totalorder %s25, 1
      %p153 = por %p151, %p152
      %p155 = scmp.ne.s32.totalorder %s140, %s154
      %p156 = scmp.eq.s32.totalorder %s25, 0
      %p157 = por %p155, %p156
      %s159 = sadd.s32 %s158, 1
      %p162 = scmp.eq.s32.totalorder %s19, 1
      %p163 = scmp.ne.s32.totalorder %s158, %s160
      %p164 = scmp.eq.s32.totalorder %s19, 0
      %p165 = por %p163, %p164
      %p166 = scmp.ne.s32.totalorder %s158, %s160
      %p167 = scmp.eq.s32.totalorder %s24, 1
      %p168 = por %p166, %p167
      %p169 = scmp.ne.s32.totalorder %s160, %s161
      %p170 = scmp.eq.s32.totalorder %s24, 0
      %p171 = por %p169, %p170
      %p172 = scmp.ne.s32.totalorder %s160, %s161
      %p173 = scmp.eq.s32.totalorder %s25, 1
      %p174 = por %p172, %p173
      %p176 = scmp.ne.s32.totalorder %s161, %s175
      %p177 = scmp.eq.s32.totalorder %s25, 0
      %p178 = por %p176, %p177
      %s179 = ssub.s32 %s19, %s26
      %p180 = scmp.eq.s32.totalorder %s179, 0
      %s182 = sadd.s32 %s181, 1
      %s183 = scalar_select %p180, %s181, %s182
      %p186 = pneg %p180
      %p187 = scmp.eq.s32.totalorder %s19, 1
      %p188 = por %p186, %p187
      %p189 = scmp.ne.s32.totalorder %s181, %s184
      %p190 = scmp.eq.s32.totalorder %s19, 0
      %p191 = por %p189, %p190
      %p192 = scmp.ne.s32.totalorder %s181, %s184
      %p193 = scmp.eq.s32.totalorder %s24, 1
      %p194 = por %p192, %p193
      %p195 = scmp.ne.s32.totalorder %s184, %s185
      %p196 = scmp.eq.s32.totalorder %s24, 0
      %p197 = por %p195, %p196
      %p198 = scmp.ne.s32.totalorder %s184, %s185
      %p199 = scmp.eq.s32.totalorder %s25, 1
      %p200 = por %p198, %p199
      %p202 = scmp.ne.s32.totalorder %s185, %s201
      %p203 = scmp.eq.s32.totalorder %s25, 0
      %p204 = por %p202, %p203
      %p205 = scmp.le.s32.totalorder 1, %s19
      %p206 = scmp.lt.s32.totalorder %s19, 3
      %p207 = pnand %p205, %p206
      %p208 = pneg %p207
      // Predicated region
      $region9: #{tpu_custom_call.1} parent=5 // pred_check
        _
      $region10: #{tpu_custom_call.1} parent=5 // pred_check_branch
        %210 = sbr.rel (%p207) target = $region12
      $region11: #{tpu_custom_call.1} parent=5 // pred_region
        %s211 = ssub.s32 %s19, 1
        // Predicated region
        $region13: #{tpu_custom_call.1} parent=11 // pred_check
          %p212 = pneg %p66
        $region14: #{tpu_custom_call.1} parent=11 // pred_check_branch
          %214 = sbr.rel (%p212) target = $region16
        $region15: #{tpu_custom_call.1} parent=11 // pred_region
          %216 = vsyncadd [#allocation6], 0
          %s217 = sshll.u32 %s1, 4
          %s218 = int_to_ptr.hbm [resolvable:$true] %s217
          %s219 = sshll.u32 [#allocation5], 4
          %s220 = int_to_ptr.vmem [resolvable:$true] %s219
          %225 = dma.hbm_to_vmem [thread:$0]  %s218, 4096, %s220, [#allocation6], 256, 256, 16
        $region16: #{tpu_custom_call.1} parent=11 // pred_fallthru
          _
        // Predicated region
        $region17: #{tpu_custom_call.1} parent=11 // pred_check
          %p226 = pneg %p87
        $region18: #{tpu_custom_call.1} parent=11 // pred_check_branch
          %228 = sbr.rel (%p226) target = $region20
        $region19: #{tpu_custom_call.1} parent=11 // pred_region
          %230 = vsyncadd [#allocation6], 0
          %s232 = sshll.u32 %s2, 4
          %s233 = int_to_ptr.hbm [resolvable:$true] %s232
          %s234 = sshll.u32 [#allocation7], 4
          %s235 = int_to_ptr.vmem [resolvable:$true] %s234
          %237 = dma.hbm_to_vmem [thread:$0]  %s233, 64, %s235, [#allocation6]
        $region20: #{tpu_custom_call.1} parent=11 // pred_fallthru
          _
        // Predicated region
        $region21: #{tpu_custom_call.1} parent=11 // pred_check
          %p238 = pneg %p108
        $region22: #{tpu_custom_call.1} parent=11 // pred_check_branch
          %240 = sbr.rel (%p238) target = $region24
        $region23: #{tpu_custom_call.1} parent=11 // pred_region
          %242 = vsyncadd [#allocation9], 0
          %s243 = sshll.u32 %s3, 4
          %s244 = int_to_ptr.hbm [resolvable:$true] %s243
          %s245 = sshll.u32 [#allocation8], 4
          %s246 = int_to_ptr.vmem [resolvable:$true] %s245
          %251 = dma.hbm_to_vmem [thread:$0]  %s244, 8192, %s246, [#allocation9], 128, 128, 8
        $region24: #{tpu_custom_call.1} parent=11 // pred_fallthru
          _
        // Predicated region
        $region25: #{tpu_custom_call.1} parent=11 // pred_check
          %p252 = pneg %p129
        $region26: #{tpu_custom_call.1} parent=11 // pred_check_branch
          %254 = sbr.rel (%p252) target = $region28
        $region27: #{tpu_custom_call.1} parent=11 // pred_region
          _
        $region28: #{tpu_custom_call.1} parent=11 // pred_fallthru
          _
        // Predicated region
        $region29: #{tpu_custom_call.1} parent=11 // pred_check
          %p255 = pneg %p150
        $region30: #{tpu_custom_call.1} parent=11 // pred_check_branch
          %257 = sbr.rel (%p255) target = $region32
        $region31: #{tpu_custom_call.1} parent=11 // pred_region
          _
        $region32: #{tpu_custom_call.1} parent=11 // pred_fallthru
          _
        // Predicated region
        $region33: #{tpu_custom_call.1} parent=11 // pred_check
          %p258 = pneg %p171
        $region34: #{tpu_custom_call.1} parent=11 // pred_check_branch
          %260 = sbr.rel (%p258) target = $region36
        $region35: #{tpu_custom_call.1} parent=11 // pred_region
          _
        $region36: #{tpu_custom_call.1} parent=11 // pred_fallthru
          _
      $region12: #{tpu_custom_call.1} parent=5 // pred_fallthru
        _
      %p261 = scmp.lt.s32.totalorder %s19, 2
      // Predicated region
      $region37: #{tpu_custom_call.1} parent=5 // pred_check
        %p262 = pneg %p261
      $region38: #{tpu_custom_call.1} parent=5 // pred_check_branch
        %264 = sbr.rel (%p262) target = $region40
      $region39: #{tpu_custom_call.1} parent=5 // pred_region
        // Predicated region
        $region41: #{tpu_custom_call.1} parent=39 // pred_check
          %p265 = pneg %p39
        $region42: #{tpu_custom_call.1} parent=39 // pred_check_branch
          %267 = sbr.rel (%p265) target = $region44
        $region43: #{tpu_custom_call.1} parent=39 // pred_region
          %s268 = sand.u32 %s29, 1
          %s269 = scalar_lea.sflag [#allocation4], %s268
          %s270 = sand.u32 %s29, 1
          %s271 = smul.addr %s270, 64
          %s272 = scalar_lea.vmem [#allocation3], %s271
          %s273 = smul.u32 16, %s19
          %275 = vsyncadd %s269, 0
          %s276 = smul.addr %s273, 4
          %s277 = scalar_lea.hbm %s0, %s276
          %s278 = sshll.u32 %s277, 4
          %s279 = int_to_ptr.hbm [resolvable:$true] %s278
          %s280 = sshll.u32 %s272, 4
          %s281 = int_to_ptr.vmem [resolvable:$true] %s280
          %286 = dma.hbm_to_vmem [thread:$0]  %s279, 1024, %s281, %s269, 64, 64, 4
        $region44: #{tpu_custom_call.1} parent=39 // pred_fallthru
          _
      $region40: #{tpu_custom_call.1} parent=5 // pred_fallthru
        _
      %p287 = scmp.le.s32.totalorder 1, %s19
      %p288 = scmp.lt.s32.totalorder %s19, 3
      %p289 = pnand %p287, %p288
      %p290 = pneg %p289
      // Predicated region
      $region45: #{tpu_custom_call.1} parent=5 // pred_check
        _
      $region46: #{tpu_custom_call.1} parent=5 // pred_check_branch
        %292 = sbr.rel (%p289) target = $region48
      $region47: #{tpu_custom_call.1} parent=5 // pred_region
        %s293 = ssub.s32 %s19, 1
        %s294 = sand.u32 %s32, 1
        %s295 = scalar_lea.sflag [#allocation4], %s294
        %s296 = sand.u32 %s32, 1
        %s297 = smul.addr %s296, 64
        %s298 = scalar_lea.vmem [#allocation3], %s297
        // Predicated region
        $region49: #{tpu_custom_call.1} parent=47 // pred_check
          %p299 = pneg %p45
        $region50: #{tpu_custom_call.1} parent=47 // pred_check_branch
          %301 = sbr.rel (%p299) target = $region52
        $region51: #{tpu_custom_call.1} parent=47 // pred_region
          %303 = dma.done %s295, 1024
        $region52: #{tpu_custom_call.1} parent=47 // pred_fallthru
          _
        // Predicated region
        $region53: #{tpu_custom_call.1} parent=47 // pred_check
          %p304 = pneg %p66
        $region54: #{tpu_custom_call.1} parent=47 // pred_check_branch
          %306 = sbr.rel (%p304) target = $region56
        $region55: #{tpu_custom_call.1} parent=47 // pred_region
          %308 = dma.done [#allocation6], 4096
        $region56: #{tpu_custom_call.1} parent=47 // pred_fallthru
          _
        // Predicated region
        $region57: #{tpu_custom_call.1} parent=47 // pred_check
          %p309 = pneg %p87
        $region58: #{tpu_custom_call.1} parent=47 // pred_check_branch
          %311 = sbr.rel (%p309) target = $region60
        $region59: #{tpu_custom_call.1} parent=47 // pred_region
          %313 = dma.done [#allocation6], 64
        $region60: #{tpu_custom_call.1} parent=47 // pred_fallthru
          _
        // Predicated region
        $region61: #{tpu_custom_call.1} parent=47 // pred_check
          %p314 = pneg %p108
        $region62: #{tpu_custom_call.1} parent=47 // pred_check_branch
          %316 = sbr.rel (%p314) target = $region64
        $region63: #{tpu_custom_call.1} parent=47 // pred_region
          %318 = dma.done [#allocation9], 8192
        $region64: #{tpu_custom_call.1} parent=47 // pred_fallthru
          _
        %s319 = sand.u32 %s32, 1
        %s320 = scalar_lea.sflag [#allocation4], %s319
        %s321 = sand.u32 %s32, 1
        %s322 = smul.addr %s321, 64
        %s323 = scalar_lea.vmem [#allocation3], %s322
        %p324 = pneg %p45
        %p325 = pneg %p42
        %p326 = pneg %p66
        %p327 = pneg %p63
        %p328 = pneg %p87
        %p329 = pneg %p84
        %p330 = pneg %p108
        %p331 = pneg %p105
        %p332 = pneg %p129
        %p333 = pneg %p126
        %p334 = pneg %p150
        %p335 = pneg %p147
        %p336 = pneg %p171
        %p337 = pneg %p168
        %p338 = pneg %p197
        %p339 = pneg %p194
        %s340 = smul.u32 16, %s24
        %p341 = scmp.lt.s32.totalorder %s340, 31
        %s342 = scalar_select %p341, %s340, 31
        %s343 = smul.addr %s342, 8
        %s344 = scalar_lea.vmem %s7, %s343
        %s345 = smul.u32 16, %s24
        %s346 = smul.u32 16, %s24
        %p347 = scmp.lt.s32.totalorder %s346, 31
        %s348 = scalar_select %p347, %s346, 31
        %s349 = smul.addr %s348, 8
        %s350 = scalar_lea.vmem %s7, %s349
        %s351 = smul.u32 16, %s24
        %v352 = vld [vmem:[%s298] sm:$0xf]
        %v353 = vld [vmem:[%s298 + $0x4] sm:$0xf]
        %v354 = vld [vmem:[%s298 + $0x8] sm:$0xf]
        %v355 = vld [vmem:[%s298 + $0xc] sm:$0xf]
        %v356 = vld [vmem:[%s298 + $0x10] sm:$0xf]
        %v357 = vld [vmem:[%s298 + $0x14] sm:$0xf]
        %v358 = vld [vmem:[%s298 + $0x18] sm:$0xf]
        %v359 = vld [vmem:[%s298 + $0x1c] sm:$0xf]
        %v360 = vld [vmem:[%s298 + $0x20] sm:$0xf]
        %v361 = vld [vmem:[%s298 + $0x24] sm:$0xf]
        %v362 = vld [vmem:[%s298 + $0x28] sm:$0xf]
        %v363 = vld [vmem:[%s298 + $0x2c] sm:$0xf]
        %v364 = vld [vmem:[%s298 + $0x30] sm:$0xf]
        %v365 = vld [vmem:[%s298 + $0x34] sm:$0xf]
        %v366 = vld [vmem:[%s298 + $0x38] sm:$0xf]
        %v367 = vld [vmem:[%s298 + $0x3c] sm:$0xf]
        %v368 = vld [vmem:[#allocation5] sm:$0xff]
        %v369 = vld [vmem:[#allocation5 + $0x8] sm:$0xff]
        %v370 = vld [vmem:[#allocation5 + $0x10] sm:$0xff]
        %v371 = vld [vmem:[#allocation5 + $0x18] sm:$0xff]
        %v372 = vld [vmem:[#allocation5 + $0x20] sm:$0xff]
        %v373 = vld [vmem:[#allocation5 + $0x28] sm:$0xff]
        %v374 = vld [vmem:[#allocation5 + $0x30] sm:$0xff]
        %v375 = vld [vmem:[#allocation5 + $0x38] sm:$0xff]
        %v376 = vld [vmem:[#allocation5 + $0x40] sm:$0xff]
        %v377 = vld [vmem:[#allocation5 + $0x48] sm:$0xff]
        %v378 = vld [vmem:[#allocation5 + $0x50] sm:$0xff]
        %v379 = vld [vmem:[#allocation5 + $0x58] sm:$0xff]
        %v380 = vld [vmem:[#allocation5 + $0x60] sm:$0xff]
        %v381 = vld [vmem:[#allocation5 + $0x68] sm:$0xff]
        %v382 = vld [vmem:[#allocation5 + $0x70] sm:$0xff]
        %v383 = vld [vmem:[#allocation5 + $0x78] sm:$0xff]
        %v384 = vld [vmem:[#allocation5 + $0x80] sm:$0xff]
        %v385 = vld [vmem:[#allocation5 + $0x88] sm:$0xff]
        %v386 = vld [vmem:[#allocation5 + $0x90] sm:$0xff]
        %v387 = vld [vmem:[#allocation5 + $0x98] sm:$0xff]
        %v388 = vld [vmem:[#allocation5 + $0xa0] sm:$0xff]
        %v389 = vld [vmem:[#allocation5 + $0xa8] sm:$0xff]
        %v390 = vld [vmem:[#allocation5 + $0xb0] sm:$0xff]
        %v391 = vld [vmem:[#allocation5 + $0xb8] sm:$0xff]
        %v392 = vld [vmem:[#allocation5 + $0xc0] sm:$0xff]
        %v393 = vld [vmem:[#allocation5 + $0xc8] sm:$0xff]
        %v394 = vld [vmem:[#allocation5 + $0xd0] sm:$0xff]
        %v395 = vld [vmem:[#allocation5 + $0xd8] sm:$0xff]
        %v396 = vld [vmem:[#allocation5 + $0xe0] sm:$0xff]
        %v397 = vld [vmem:[#allocation5 + $0xe8] sm:$0xff]
        %v398 = vld [vmem:[#allocation5 + $0xf0] sm:$0xff]
        %v399 = vld [vmem:[#allocation5 + $0xf8] sm:$0xff]
        %v400 = vld [vmem:[#allocation7] sm:$0xf]
        %v402 = vperm.slane %v400, 0
        %v403 = vperm.slane %v400, 1
        %v404 = vperm.slane %v400, 2
        %v405 = vperm.slane %v400, 3
        %v426 = vunpack.c.l.b16 %v352
        %v427 = vunpack.c.l.b16 %v353
        %v428 = vunpack.c.l.b16 %v354
        %v429 = vunpack.c.l.b16 %v355
        %v430 = vunpack.c.l.b16 %v356
        %v431 = vunpack.c.l.b16 %v357
        %v432 = vunpack.c.l.b16 %v358
        %v433 = vunpack.c.l.b16 %v359
        %v434 = vunpack.c.l.b16 %v360
        %v435 = vunpack.c.l.b16 %v361
        %v436 = vunpack.c.l.b16 %v362
        %v437 = vunpack.c.l.b16 %v363
        %v438 = vunpack.c.l.b16 %v364
        %v439 = vunpack.c.l.b16 %v365
        %v440 = vunpack.c.l.b16 %v366
        %v441 = vunpack.c.l.b16 %v367
        %v442 = vpack.c.b16 %v427, %v426
        %v443 = vpack.c.b16 %v429, %v428
        %v444 = vpack.c.b16 %v431, %v430
        %v445 = vpack.c.b16 %v433, %v432
        %v446 = vpack.c.b16 %v435, %v434
        %v447 = vpack.c.b16 %v437, %v436
        %v448 = vpack.c.b16 %v439, %v438
        %v449 = vpack.c.b16 %v441, %v440
        %v490 = vunpack.c.l.b16 %v368
        %v491 = vunpack.c.h.b16 %v368
        %v492 = vunpack.c.l.b16 %v369
        %v493 = vunpack.c.h.b16 %v369
        %v494 = vunpack.c.l.b16 %v370
        %v495 = vunpack.c.h.b16 %v370
        %v496 = vunpack.c.l.b16 %v371
        %v497 = vunpack.c.h.b16 %v371
        %v498 = vunpack.c.l.b16 %v372
        %v499 = vunpack.c.h.b16 %v372
        %v500 = vunpack.c.l.b16 %v373
        %v501 = vunpack.c.h.b16 %v373
        %v502 = vunpack.c.l.b16 %v374
        %v503 = vunpack.c.h.b16 %v374
        %v504 = vunpack.c.l.b16 %v375
        %v505 = vunpack.c.h.b16 %v375
        %v506 = vunpack.c.l.b16 %v376
        %v507 = vunpack.c.h.b16 %v376
        %v508 = vunpack.c.l.b16 %v377
        %v509 = vunpack.c.h.b16 %v377
        %v510 = vunpack.c.l.b16 %v378
        %v511 = vunpack.c.h.b16 %v378
        %v512 = vunpack.c.l.b16 %v379
        %v513 = vunpack.c.h.b16 %v379
        %v514 = vunpack.c.l.b16 %v380
        %v515 = vunpack.c.h.b16 %v380
        %v516 = vunpack.c.l.b16 %v381
        %v517 = vunpack.c.h.b16 %v381
        %v518 = vunpack.c.l.b16 %v382
        %v519 = vunpack.c.h.b16 %v382
        %v520 = vunpack.c.l.b16 %v383
        %v521 = vunpack.c.h.b16 %v383
        %v522 = vunpack.c.l.b16 %v384
        %v523 = vunpack.c.h.b16 %v384
        %v524 = vunpack.c.l.b16 %v385
        %v525 = vunpack.c.h.b16 %v385
        %v526 = vunpack.c.l.b16 %v386
        %v527 = vunpack.c.h.b16 %v386
        %v528 = vunpack.c.l.b16 %v387
        %v529 = vunpack.c.h.b16 %v387
        %v530 = vunpack.c.l.b16 %v388
        %v531 = vunpack.c.h.b16 %v388
        %v532 = vunpack.c.l.b16 %v389
        %v533 = vunpack.c.h.b16 %v389
        %v534 = vunpack.c.l.b16 %v390
        %v535 = vunpack.c.h.b16 %v390
        %v536 = vunpack.c.l.b16 %v391
        %v537 = vunpack.c.h.b16 %v391
        %v538 = vunpack.c.l.b16 %v392
        %v539 = vunpack.c.h.b16 %v392
        %v540 = vunpack.c.l.b16 %v393
        %v541 = vunpack.c.h.b16 %v393
        %v542 = vunpack.c.l.b16 %v394
        %v543 = vunpack.c.h.b16 %v394
        %v544 = vunpack.c.l.b16 %v395
        %v545 = vunpack.c.h.b16 %v395
        %v546 = vunpack.c.l.b16 %v396
        %v547 = vunpack.c.h.b16 %v396
        %v548 = vunpack.c.l.b16 %v397
        %v549 = vunpack.c.h.b16 %v397
        %v550 = vunpack.c.l.b16 %v398
        %v551 = vunpack.c.h.b16 %v398
        %v552 = vunpack.c.l.b16 %v399
        %v553 = vunpack.c.h.b16 %v399
        %v554 = vpack.c.b16 %v494, %v490
        %v555 = vpack.c.b16 %v495, %v491
        %v556 = vpack.c.b16 %v496, %v492
        %v557 = vpack.c.b16 %v497, %v493
        %v558 = vpack.c.b16 %v502, %v498
        %v559 = vpack.c.b16 %v503, %v499
        %v560 = vpack.c.b16 %v504, %v500
        %v561 = vpack.c.b16 %v505, %v501
        %v562 = vpack.c.b16 %v510, %v506
        %v563 = vpack.c.b16 %v511, %v507
        %v564 = vpack.c.b16 %v512, %v508
        %v565 = vpack.c.b16 %v513, %v509
        %v566 = vpack.c.b16 %v518, %v514
        %v567 = vpack.c.b16 %v519, %v515
        %v568 = vpack.c.b16 %v520, %v516
        %v569 = vpack.c.b16 %v521, %v517
        %v570 = vpack.c.b16 %v526, %v522
        %v571 = vpack.c.b16 %v527, %v523
        %v572 = vpack.c.b16 %v528, %v524
        %v573 = vpack.c.b16 %v529, %v525
        %v574 = vpack.c.b16 %v534, %v530
        %v575 = vpack.c.b16 %v535, %v531
        %v576 = vpack.c.b16 %v536, %v532
        %v577 = vpack.c.b16 %v537, %v533
        %v578 = vpack.c.b16 %v542, %v538
        %v579 = vpack.c.b16 %v543, %v539
        %v580 = vpack.c.b16 %v544, %v540
        %v581 = vpack.c.b16 %v545, %v541
        %v582 = vpack.c.b16 %v550, %v546
        %v583 = vpack.c.b16 %v551, %v547
        %v584 = vpack.c.b16 %v552, %v548
        %v585 = vpack.c.b16 %v553, %v549
        %618 = vmatpush.bf16.msra.mxu0 %v582
        %619 = vmatpush.bf16.msra.mxu0 %v578
        %620 = vmatpush.bf16.msra.mxu0 %v574
        %621 = vmatpush.bf16.msra.mxu0 %v570
        %622 = vmatpush.bf16.msra.mxu0 %v566
        %623 = vmatpush.bf16.msra.mxu0 %v562
        %624 = vmatpush.bf16.msra.mxu0 %v558
        %625 = vmatpush.bf16.msra.mxu0 %v554
        %626 = vmatmul.bf16.gmra.mxu0 %v442
        %v627 = vpop.f32.mrf.mxu0
        %v628 = vadd.f32 %v402, %v627
        %v629 = vpop.f32.mrf.mxu0
        %v630 = vadd.f32 %v402, %v629
        %631 = vmatmul.bf16.gmra.mxu0 %v443
        %v632 = vpop.f32.mrf.mxu0
        %v633 = vadd.f32 %v402, %v632
        %v634 = vpop.f32.mrf.mxu0
        %v635 = vadd.f32 %v402, %v634
        %636 = vmatmul.bf16.gmra.mxu0 %v444
        %v637 = vpop.f32.mrf.mxu0
        %v638 = vadd.f32 %v402, %v637
        %v639 = vpop.f32.mrf.mxu0
        %v640 = vadd.f32 %v402, %v639
        %641 = vmatmul.bf16.gmra.mxu0 %v445
        %v642 = vpop.f32.mrf.mxu0
        %v643 = vadd.f32 %v402, %v642
        %v644 = vpop.f32.mrf.mxu0
        %v645 = vadd.f32 %v402, %v644
        %646 = vmatmul.bf16.gmra.mxu0 %v446
        %v647 = vpop.f32.mrf.mxu0
        %v648 = vadd.f32 %v402, %v647
        %v649 = vpop.f32.mrf.mxu0
        %v650 = vadd.f32 %v402, %v649
        %651 = vmatmul.bf16.gmra.mxu0 %v447
        %v652 = vpop.f32.mrf.mxu0
        %v653 = vadd.f32 %v402, %v652
        %v654 = vpop.f32.mrf.mxu0
        %v655 = vadd.f32 %v402, %v654
        %656 = vmatmul.bf16.gmra.mxu0 %v448
        %v657 = vpop.f32.mrf.mxu0
        %v658 = vadd.f32 %v402, %v657
        %v659 = vpop.f32.mrf.mxu0
        %v660 = vadd.f32 %v402, %v659
        %661 = vmatmul.bf16.gmra.mxu0 %v449
        %v662 = vpop.f32.mrf.mxu0
        %v663 = vadd.f32 %v402, %v662
        %v664 = vpop.f32.mrf.mxu0
        %v665 = vadd.f32 %v402, %v664
        %666 = vdwg.mxu0
        %667 = vmatpush.bf16.msra.mxu0 %v583
        %668 = vmatpush.bf16.msra.mxu0 %v579
        %669 = vmatpush.bf16.msra.mxu0 %v575
        %670 = vmatpush.bf16.msra.mxu0 %v571
        %671 = vmatpush.bf16.msra.mxu0 %v567
        %672 = vmatpush.bf16.msra.mxu0 %v563
        %673 = vmatpush.bf16.msra.mxu0 %v559
        %674 = vmatpush.bf16.msra.mxu0 %v555
        %675 = vmatmul.bf16.gmra.mxu0 %v442
        %v676 = vpop.f32.mrf.mxu0
        %v677 = vadd.f32 %v403, %v676
        %v678 = vpop.f32.mrf.mxu0
        %v679 = vadd.f32 %v403, %v678
        %680 = vmatmul.bf16.gmra.mxu0 %v443
        %v681 = vpop.f32.mrf.mxu0
        %v682 = vadd.f32 %v403, %v681
        %v683 = vpop.f32.mrf.mxu0
        %v684 = vadd.f32 %v403, %v683
        %685 = vmatmul.bf16.gmra.mxu0 %v444
        %v686 = vpop.f32.mrf.mxu0
        %v687 = vadd.f32 %v403, %v686
        %v688 = vpop.f32.mrf.mxu0
        %v689 = vadd.f32 %v403, %v688
        %690 = vmatmul.bf16.gmra.mxu0 %v445
        %v691 = vpop.f32.mrf.mxu0
        %v692 = vadd.f32 %v403, %v691
        %v693 = vpop.f32.mrf.mxu0
        %v694 = vadd.f32 %v403, %v693
        %695 = vmatmul.bf16.gmra.mxu0 %v446
        %v696 = vpop.f32.mrf.mxu0
        %v697 = vadd.f32 %v403, %v696
        %v698 = vpop.f32.mrf.mxu0
        %v699 = vadd.f32 %v403, %v698
        %700 = vmatmul.bf16.gmra.mxu0 %v447
        %v701 = vpop.f32.mrf.mxu0
        %v702 = vadd.f32 %v403, %v701
        %v703 = vpop.f32.mrf.mxu0
        %v704 = vadd.f32 %v403, %v703
        %705 = vmatmul.bf16.gmra.mxu0 %v448
        %v706 = vpop.f32.mrf.mxu0
        %v707 = vadd.f32 %v403, %v706
        %v708 = vpop.f32.mrf.mxu0
        %v709 = vadd.f32 %v403, %v708
        %710 = vmatmul.bf16.gmra.mxu0 %v449
        %v711 = vpop.f32.mrf.mxu0
        %v712 = vadd.f32 %v403, %v711
        %v713 = vpop.f32.mrf.mxu0
        %v714 = vadd.f32 %v403, %v713
        %715 = vdwg.mxu0
        %716 = vmatpush.bf16.msra.mxu0 %v584
        %717 = vmatpush.bf16.msra.mxu0 %v580
        %718 = vmatpush.bf16.msra.mxu0 %v576
        %719 = vmatpush.bf16.msra.mxu0 %v572
        %720 = vmatpush.bf16.msra.mxu0 %v568
        %721 = vmatpush.bf16.msra.mxu0 %v564
        %722 = vmatpush.bf16.msra.mxu0 %v560
        %723 = vmatpush.bf16.msra.mxu0 %v556
        %724 = vmatmul.bf16.gmra.mxu0 %v442
        %v725 = vpop.f32.mrf.mxu0
        %v726 = vadd.f32 %v404, %v725
        %v727 = vpop.f32.mrf.mxu0
        %v728 = vadd.f32 %v404, %v727
        %729 = vmatmul.bf16.gmra.mxu0 %v443
        %v730 = vpop.f32.mrf.mxu0
        %v731 = vadd.f32 %v404, %v730
        %v732 = vpop.f32.mrf.mxu0
        %v733 = vadd.f32 %v404, %v732
        %734 = vmatmul.bf16.gmra.mxu0 %v444
        %v735 = vpop.f32.mrf.mxu0
        %v736 = vadd.f32 %v404, %v735
        %v737 = vpop.f32.mrf.mxu0
        %v738 = vadd.f32 %v404, %v737
        %739 = vmatmul.bf16.gmra.mxu0 %v445
        %v740 = vpop.f32.mrf.mxu0
        %v741 = vadd.f32 %v404, %v740
        %v742 = vpop.f32.mrf.mxu0
        %v743 = vadd.f32 %v404, %v742
        %744 = vmatmul.bf16.gmra.mxu0 %v446
        %v745 = vpop.f32.mrf.mxu0
        %v746 = vadd.f32 %v404, %v745
        %v747 = vpop.f32.mrf.mxu0
        %v748 = vadd.f32 %v404, %v747
        %749 = vmatmul.bf16.gmra.mxu0 %v447
        %v750 = vpop.f32.mrf.mxu0
        %v751 = vadd.f32 %v404, %v750
        %v752 = vpop.f32.mrf.mxu0
        %v753 = vadd.f32 %v404, %v752
        %754 = vmatmul.bf16.gmra.mxu0 %v448
        %v755 = vpop.f32.mrf.mxu0
        %v756 = vadd.f32 %v404, %v755
        %v757 = vpop.f32.mrf.mxu0
        %v758 = vadd.f32 %v404, %v757
        %759 = vmatmul.bf16.gmra.mxu0 %v449
        %v760 = vpop.f32.mrf.mxu0
        %v761 = vadd.f32 %v404, %v760
        %v762 = vpop.f32.mrf.mxu0
        %v763 = vadd.f32 %v404, %v762
        %764 = vdwg.mxu0
        %765 = vmatpush.bf16.msra.mxu0 %v585
        %766 = vmatpush.bf16.msra.mxu0 %v581
        %767 = vmatpush.bf16.msra.mxu0 %v577
        %768 = vmatpush.bf16.msra.mxu0 %v573
        %769 = vmatpush.bf16.msra.mxu0 %v569
        %770 = vmatpush.bf16.msra.mxu0 %v565
        %771 = vmatpush.bf16.msra.mxu0 %v561
        %772 = vmatpush.bf16.msra.mxu0 %v557
        %773 = vmatmul.bf16.gmra.mxu0 %v442
        %v774 = vpop.f32.mrf.mxu0
        %v775 = vadd.f32 %v405, %v774
        %v776 = vpop.f32.mrf.mxu0
        %v777 = vadd.f32 %v405, %v776
        %778 = vmatmul.bf16.gmra.mxu0 %v443
        %v779 = vpop.f32.mrf.mxu0
        %v780 = vadd.f32 %v405, %v779
        %v781 = vpop.f32.mrf.mxu0
        %v782 = vadd.f32 %v405, %v781
        %783 = vmatmul.bf16.gmra.mxu0 %v444
        %v784 = vpop.f32.mrf.mxu0
        %v785 = vadd.f32 %v405, %v784
        %v786 = vpop.f32.mrf.mxu0
        %v787 = vadd.f32 %v405, %v786
        %788 = vmatmul.bf16.gmra.mxu0 %v445
        %v789 = vpop.f32.mrf.mxu0
        %v790 = vadd.f32 %v405, %v789
        %v791 = vpop.f32.mrf.mxu0
        %v792 = vadd.f32 %v405, %v791
        %793 = vmatmul.bf16.gmra.mxu0 %v446
        %v794 = vpop.f32.mrf.mxu0
        %v795 = vadd.f32 %v405, %v794
        %v796 = vpop.f32.mrf.mxu0
        %v797 = vadd.f32 %v405, %v796
        %798 = vmatmul.bf16.gmra.mxu0 %v447
        %v799 = vpop.f32.mrf.mxu0
        %v800 = vadd.f32 %v405, %v799
        %v801 = vpop.f32.mrf.mxu0
        %v802 = vadd.f32 %v405, %v801
        %803 = vmatmul.bf16.gmra.mxu0 %v448
        %v804 = vpop.f32.mrf.mxu0
        %v805 = vadd.f32 %v405, %v804
        %v806 = vpop.f32.mrf.mxu0
        %v807 = vadd.f32 %v405, %v806
        %808 = vmatmul.bf16.gmra.mxu0 %v449
        %v809 = vpop.f32.mrf.mxu0
        %v810 = vadd.f32 %v405, %v809
        %v811 = vpop.f32.mrf.mxu0
        %v812 = vadd.f32 %v405, %v811
        %813 = vdwg.mxu0
        %v814 = vmax.f32 %v628, 0.0
        %v815 = vmax.f32 %v677, 0.0
        %v816 = vmax.f32 %v726, 0.0
        %v817 = vmax.f32 %v775, 0.0
        %v818 = vmax.f32 %v630, 0.0
        %v819 = vmax.f32 %v679, 0.0
        %v820 = vmax.f32 %v728, 0.0
        %v821 = vmax.f32 %v777, 0.0
        %v822 = vmax.f32 %v633, 0.0
        %v823 = vmax.f32 %v682, 0.0
        %v824 = vmax.f32 %v731, 0.0
        %v825 = vmax.f32 %v780, 0.0
        %v826 = vmax.f32 %v635, 0.0
        %v827 = vmax.f32 %v684, 0.0
        %v828 = vmax.f32 %v733, 0.0
        %v829 = vmax.f32 %v782, 0.0
        %v830 = vmax.f32 %v638, 0.0
        %v831 = vmax.f32 %v687, 0.0
        %v832 = vmax.f32 %v736, 0.0
        %v833 = vmax.f32 %v785, 0.0
        %v834 = vmax.f32 %v640, 0.0
        %v835 = vmax.f32 %v689, 0.0
        %v836 = vmax.f32 %v738, 0.0
        %v837 = vmax.f32 %v787, 0.0
        %v838 = vmax.f32 %v643, 0.0
        %v839 = vmax.f32 %v692, 0.0
        %v840 = vmax.f32 %v741, 0.0
        %v841 = vmax.f32 %v790, 0.0
        %v842 = vmax.f32 %v645, 0.0
        %v843 = vmax.f32 %v694, 0.0
        %v844 = vmax.f32 %v743, 0.0
        %v845 = vmax.f32 %v792, 0.0
        %v846 = vmax.f32 %v648, 0.0
        %v847 = vmax.f32 %v697, 0.0
        %v848 = vmax.f32 %v746, 0.0
        %v849 = vmax.f32 %v795, 0.0
        %v850 = vmax.f32 %v650, 0.0
        %v851 = vmax.f32 %v699, 0.0
        %v852 = vmax.f32 %v748, 0.0
        %v853 = vmax.f32 %v797, 0.0
        %v854 = vmax.f32 %v653, 0.0
        %v855 = vmax.f32 %v702, 0.0
        %v856 = vmax.f32 %v751, 0.0
        %v857 = vmax.f32 %v800, 0.0
        %v858 = vmax.f32 %v655, 0.0
        %v859 = vmax.f32 %v704, 0.0
        %v860 = vmax.f32 %v753, 0.0
        %v861 = vmax.f32 %v802, 0.0
        %v862 = vmax.f32 %v658, 0.0
        %v863 = vmax.f32 %v707, 0.0
        %v864 = vmax.f32 %v756, 0.0
        %v865 = vmax.f32 %v805, 0.0
        %v866 = vmax.f32 %v660, 0.0
        %v867 = vmax.f32 %v709, 0.0
        %v868 = vmax.f32 %v758, 0.0
        %v869 = vmax.f32 %v807, 0.0
        %v870 = vmax.f32 %v663, 0.0
        %v871 = vmax.f32 %v712, 0.0
        %v872 = vmax.f32 %v761, 0.0
        %v873 = vmax.f32 %v810, 0.0
        %v874 = vmax.f32 %v665, 0.0
        %v875 = vmax.f32 %v714, 0.0
        %v876 = vmax.f32 %v763, 0.0
        %v877 = vmax.f32 %v812, 0.0
        %v878 = vpack.c.bf16 %v818, %v814
        %v879 = vpack.c.bf16 %v819, %v815
        %v880 = vpack.c.bf16 %v820, %v816
        %v881 = vpack.c.bf16 %v821, %v817
        %v882 = vpack.c.bf16 %v826, %v822
        %v883 = vpack.c.bf16 %v827, %v823
        %v884 = vpack.c.bf16 %v828, %v824
        %v885 = vpack.c.bf16 %v829, %v825
        %v886 = vpack.c.bf16 %v834, %v830
        %v887 = vpack.c.bf16 %v835, %v831
        %v888 = vpack.c.bf16 %v836, %v832
        %v889 = vpack.c.bf16 %v837, %v833
        %v890 = vpack.c.bf16 %v842, %v838
        %v891 = vpack.c.bf16 %v843, %v839
        %v892 = vpack.c.bf16 %v844, %v840
        %v893 = vpack.c.bf16 %v845, %v841
        %v894 = vpack.c.bf16 %v850, %v846
        %v895 = vpack.c.bf16 %v851, %v847
        %v896 = vpack.c.bf16 %v852, %v848
        %v897 = vpack.c.bf16 %v853, %v849
        %v898 = vpack.c.bf16 %v858, %v854
        %v899 = vpack.c.bf16 %v859, %v855
        %v900 = vpack.c.bf16 %v860, %v856
        %v901 = vpack.c.bf16 %v861, %v857
        %v902 = vpack.c.bf16 %v866, %v862
        %v903 = vpack.c.bf16 %v867, %v863
        %v904 = vpack.c.bf16 %v868, %v864
        %v905 = vpack.c.bf16 %v869, %v865
        %v906 = vpack.c.bf16 %v874, %v870
        %v907 = vpack.c.bf16 %v875, %v871
        %v908 = vpack.c.bf16 %v876, %v872
        %v909 = vpack.c.bf16 %v877, %v873
        %v910 = vld [vmem:[#allocation8] sm:$0xff]
        %v911 = vld [vmem:[#allocation8 + $0x8] sm:$0xff]
        %v912 = vld [vmem:[#allocation8 + $0x10] sm:$0xff]
        %v913 = vld [vmem:[#allocation8 + $0x18] sm:$0xff]
        %v914 = vld [vmem:[#allocation8 + $0x20] sm:$0xff]
        %v915 = vld [vmem:[#allocation8 + $0x28] sm:$0xff]
        %v916 = vld [vmem:[#allocation8 + $0x30] sm:$0xff]
        %v917 = vld [vmem:[#allocation8 + $0x38] sm:$0xff]
        %v918 = vld [vmem:[#allocation8 + $0x40] sm:$0xff]
        %v919 = vld [vmem:[#allocation8 + $0x48] sm:$0xff]
        %v920 = vld [vmem:[#allocation8 + $0x50] sm:$0xff]
        %v921 = vld [vmem:[#allocation8 + $0x58] sm:$0xff]
        %v922 = vld [vmem:[#allocation8 + $0x60] sm:$0xff]
        %v923 = vld [vmem:[#allocation8 + $0x68] sm:$0xff]
        %v924 = vld [vmem:[#allocation8 + $0x70] sm:$0xff]
        %v925 = vld [vmem:[#allocation8 + $0x78] sm:$0xff]
        %v926 = vld [vmem:[#allocation8 + $0x80] sm:$0xff]
        %v927 = vld [vmem:[#allocation8 + $0x88] sm:$0xff]
        %v928 = vld [vmem:[#allocation8 + $0x90] sm:$0xff]
        %v929 = vld [vmem:[#allocation8 + $0x98] sm:$0xff]
        %v930 = vld [vmem:[#allocation8 + $0xa0] sm:$0xff]
        %v931 = vld [vmem:[#allocation8 + $0xa8] sm:$0xff]
        %v932 = vld [vmem:[#allocation8 + $0xb0] sm:$0xff]
        %v933 = vld [vmem:[#allocation8 + $0xb8] sm:$0xff]
        %v934 = vld [vmem:[#allocation8 + $0xc0] sm:$0xff]
        %v935 = vld [vmem:[#allocation8 + $0xc8] sm:$0xff]
        %v936 = vld [vmem:[#allocation8 + $0xd0] sm:$0xff]
        %v937 = vld [vmem:[#allocation8 + $0xd8] sm:$0xff]
        %v938 = vld [vmem:[#allocation8 + $0xe0] sm:$0xff]
        %v939 = vld [vmem:[#allocation8 + $0xe8] sm:$0xff]
        %v940 = vld [vmem:[#allocation8 + $0xf0] sm:$0xff]
        %v941 = vld [vmem:[#allocation8 + $0xf8] sm:$0xff]
        %v942 = vld [vmem:[#allocation8 + $0x100] sm:$0xff]
        %v943 = vld [vmem:[#allocation8 + $0x108] sm:$0xff]
        %v944 = vld [vmem:[#allocation8 + $0x110] sm:$0xff]
        %v945 = vld [vmem:[#allocation8 + $0x118] sm:$0xff]
        %v946 = vld [vmem:[#allocation8 + $0x120] sm:$0xff]
        %v947 = vld [vmem:[#allocation8 + $0x128] sm:$0xff]
        %v948 = vld [vmem:[#allocation8 + $0x130] sm:$0xff]
        %v949 = vld [vmem:[#allocation8 + $0x138] sm:$0xff]
        %v950 = vld [vmem:[#allocation8 + $0x140] sm:$0xff]
        %v951 = vld [vmem:[#allocation8 + $0x148] sm:$0xff]
        %v952 = vld [vmem:[#allocation8 + $0x150] sm:$0xff]
        %v953 = vld [vmem:[#allocation8 + $0x158] sm:$0xff]
        %v954 = vld [vmem:[#allocation8 + $0x160] sm:$0xff]
        %v955 = vld [vmem:[#allocation8 + $0x168] sm:$0xff]
        %v956 = vld [vmem:[#allocation8 + $0x170] sm:$0xff]
        %v957 = vld [vmem:[#allocation8 + $0x178] sm:$0xff]
        %v958 = vld [vmem:[#allocation8 + $0x180] sm:$0xff]
        %v959 = vld [vmem:[#allocation8 + $0x188] sm:$0xff]
        %v960 = vld [vmem:[#allocation8 + $0x190] sm:$0xff]
        %v961 = vld [vmem:[#allocation8 + $0x198] sm:$0xff]
        %v962 = vld [vmem:[#allocation8 + $0x1a0] sm:$0xff]
        %v963 = vld [vmem:[#allocation8 + $0x1a8] sm:$0xff]
        %v964 = vld [vmem:[#allocation8 + $0x1b0] sm:$0xff]
        %v965 = vld [vmem:[#allocation8 + $0x1b8] sm:$0xff]
        %v966 = vld [vmem:[#allocation8 + $0x1c0] sm:$0xff]
        %v967 = vld [vmem:[#allocation8 + $0x1c8] sm:$0xff]
        %v968 = vld [vmem:[#allocation8 + $0x1d0] sm:$0xff]
        %v969 = vld [vmem:[#allocation8 + $0x1d8] sm:$0xff]
        %v970 = vld [vmem:[#allocation8 + $0x1e0] sm:$0xff]
        %v971 = vld [vmem:[#allocation8 + $0x1e8] sm:$0xff]
        %v972 = vld [vmem:[#allocation8 + $0x1f0] sm:$0xff]
        %v973 = vld [vmem:[#allocation8 + $0x1f8] sm:$0xff]
        %v974 = vld [vmem:[%s4] sm:$0x3]
        %v976 = vperm.slane %v974, 0
        %v977 = vperm.slane %v974, 1
        %v1044 = vunpack.c.l.b16 %v910
        %v1045 = vunpack.c.h.b16 %v910
        %v1046 = vunpack.c.l.b16 %v911
        %v1047 = vunpack.c.h.b16 %v911
        %v1048 = vunpack.c.l.b16 %v912
        %v1049 = vunpack.c.h.b16 %v912
        %v1050 = vunpack.c.l.b16 %v913
        %v1051 = vunpack.c.h.b16 %v913
        %v1052 = vunpack.c.l.b16 %v914
        %v1053 = vunpack.c.h.b16 %v914
        %v1054 = vunpack.c.l.b16 %v915
        %v1055 = vunpack.c.h.b16 %v915
        %v1056 = vunpack.c.l.b16 %v916
        %v1057 = vunpack.c.h.b16 %v916
        %v1058 = vunpack.c.l.b16 %v917
        %v1059 = vunpack.c.h.b16 %v917
        %v1060 = vunpack.c.l.b16 %v918
        %v1061 = vunpack.c.h.b16 %v918
        %v1062 = vunpack.c.l.b16 %v919
        %v1063 = vunpack.c.h.b16 %v919
        %v1064 = vunpack.c.l.b16 %v920
        %v1065 = vunpack.c.h.b16 %v920
        %v1066 = vunpack.c.l.b16 %v921
        %v1067 = vunpack.c.h.b16 %v921
        %v1068 = vunpack.c.l.b16 %v922
        %v1069 = vunpack.c.h.b16 %v922
        %v1070 = vunpack.c.l.b16 %v923
        %v1071 = vunpack.c.h.b16 %v923
        %v1072 = vunpack.c.l.b16 %v924
        %v1073 = vunpack.c.h.b16 %v924
        %v1074 = vunpack.c.l.b16 %v925
        %v1075 = vunpack.c.h.b16 %v925
        %v1076 = vunpack.c.l.b16 %v926
        %v1077 = vunpack.c.h.b16 %v926
        %v1078 = vunpack.c.l.b16 %v927
        %v1079 = vunpack.c.h.b16 %v927
        %v1080 = vunpack.c.l.b16 %v928
        %v1081 = vunpack.c.h.b16 %v928
        %v1082 = vunpack.c.l.b16 %v929
        %v1083 = vunpack.c.h.b16 %v929
        %v1084 = vunpack.c.l.b16 %v930
        %v1085 = vunpack.c.h.b16 %v930
        %v1086 = vunpack.c.l.b16 %v931
        %v1087 = vunpack.c.h.b16 %v931
        %v1088 = vunpack.c.l.b16 %v932
        %v1089 = vunpack.c.h.b16 %v932
        %v1090 = vunpack.c.l.b16 %v933
        %v1091 = vunpack.c.h.b16 %v933
        %v1092 = vunpack.c.l.b16 %v934
        %v1093 = vunpack.c.h.b16 %v934
        %v1094 = vunpack.c.l.b16 %v935
        %v1095 = vunpack.c.h.b16 %v935
        %v1096 = vunpack.c.l.b16 %v936
        %v1097 = vunpack.c.h.b16 %v936
        %v1098 = vunpack.c.l.b16 %v937
        %v1099 = vunpack.c.h.b16 %v937
        %v1100 = vunpack.c.l.b16 %v938
        %v1101 = vunpack.c.h.b16 %v938
        %v1102 = vunpack.c.l.b16 %v939
        %v1103 = vunpack.c.h.b16 %v939
        %v1104 = vunpack.c.l.b16 %v940
        %v1105 = vunpack.c.h.b16 %v940
        %v1106 = vunpack.c.l.b16 %v941
        %v1107 = vunpack.c.h.b16 %v941
        %v1108 = vunpack.c.l.b16 %v942
        %v1109 = vunpack.c.h.b16 %v942
        %v1110 = vunpack.c.l.b16 %v943
        %v1111 = vunpack.c.h.b16 %v943
        %v1112 = vunpack.c.l.b16 %v944
        %v1113 = vunpack.c.h.b16 %v944
        %v1114 = vunpack.c.l.b16 %v945
        %v1115 = vunpack.c.h.b16 %v945
        %v1116 = vunpack.c.l.b16 %v946
        %v1117 = vunpack.c.h.b16 %v946
        %v1118 = vunpack.c.l.b16 %v947
        %v1119 = vunpack.c.h.b16 %v947
        %v1120 = vunpack.c.l.b16 %v948
        %v1121 = vunpack.c.h.b16 %v948
        %v1122 = vunpack.c.l.b16 %v949
        %v1123 = vunpack.c.h.b16 %v949
        %v1124 = vunpack.c.l.b16 %v950
        %v1125 = vunpack.c.h.b16 %v950
        %v1126 = vunpack.c.l.b16 %v951
        %v1127 = vunpack.c.h.b16 %v951
        %v1128 = vunpack.c.l.b16 %v952
        %v1129 = vunpack.c.h.b16 %v952
        %v1130 = vunpack.c.l.b16 %v953
        %v1131 = vunpack.c.h.b16 %v953
        %v1132 = vunpack.c.l.b16 %v954
        %v1133 = vunpack.c.h.b16 %v954
        %v1134 = vunpack.c.l.b16 %v955
        %v1135 = vunpack.c.h.b16 %v955
        %v1136 = vunpack.c.l.b16 %v956
        %v1137 = vunpack.c.h.b16 %v956
        %v1138 = vunpack.c.l.b16 %v957
        %v1139 = vunpack.c.h.b16 %v957
        %v1140 = vunpack.c.l.b16 %v958
        %v1141 = vunpack.c.h.b16 %v958
        %v1142 = vunpack.c.l.b16 %v959
        %v1143 = vunpack.c.h.b16 %v959
        %v1144 = vunpack.c.l.b16 %v960
        %v1145 = vunpack.c.h.b16 %v960
        %v1146 = vunpack.c.l.b16 %v961
        %v1147 = vunpack.c.h.b16 %v961
        %v1148 = vunpack.c.l.b16 %v962
        %v1149 = vunpack.c.h.b16 %v962
        %v1150 = vunpack.c.l.b16 %v963
        %v1151 = vunpack.c.h.b16 %v963
        %v1152 = vunpack.c.l.b16 %v964
        %v1153 = vunpack.c.h.b16 %v964
        %v1154 = vunpack.c.l.b16 %v965
        %v1155 = vunpack.c.h.b16 %v965
        %v1156 = vunpack.c.l.b16 %v966
        %v1157 = vunpack.c.h.b16 %v966
        %v1158 = vunpack.c.l.b16 %v967
        %v1159 = vunpack.c.h.b16 %v967
        %v1160 = vunpack.c.l.b16 %v968
        %v1161 = vunpack.c.h.b16 %v968
        %v1162 = vunpack.c.l.b16 %v969
        %v1163 = vunpack.c.h.b16 %v969
        %v1164 = vunpack.c.l.b16 %v970
        %v1165 = vunpack.c.h.b16 %v970
        %v1166 = vunpack.c.l.b16 %v971
        %v1167 = vunpack.c.h.b16 %v971
        %v1168 = vunpack.c.l.b16 %v972
        %v1169 = vunpack.c.h.b16 %v972
        %v1170 = vunpack.c.l.b16 %v973
        %v1171 = vunpack.c.h.b16 %v973
        %v1172 = vpack.c.b16 %v1046, %v1044
        %v1173 = vpack.c.b16 %v1047, %v1045
        %v1174 = vpack.c.b16 %v1050, %v1048
        %v1175 = vpack.c.b16 %v1051, %v1049
        %v1176 = vpack.c.b16 %v1054, %v1052
        %v1177 = vpack.c.b16 %v1055, %v1053
        %v1178 = vpack.c.b16 %v1058, %v1056
        %v1179 = vpack.c.b16 %v1059, %v1057
        %v1180 = vpack.c.b16 %v1062, %v1060
        %v1181 = vpack.c.b16 %v1063, %v1061
        %v1182 = vpack.c.b16 %v1066, %v1064
        %v1183 = vpack.c.b16 %v1067, %v1065
        %v1184 = vpack.c.b16 %v1070, %v1068
        %v1185 = vpack.c.b16 %v1071, %v1069
        %v1186 = vpack.c.b16 %v1074, %v1072
        %v1187 = vpack.c.b16 %v1075, %v1073
        %v1188 = vpack.c.b16 %v1078, %v1076
        %v1189 = vpack.c.b16 %v1079, %v1077
        %v1190 = vpack.c.b16 %v1082, %v1080
        %v1191 = vpack.c.b16 %v1083, %v1081
        %v1192 = vpack.c.b16 %v1086, %v1084
        %v1193 = vpack.c.b16 %v1087, %v1085
        %v1194 = vpack.c.b16 %v1090, %v1088
        %v1195 = vpack.c.b16 %v1091, %v1089
        %v1196 = vpack.c.b16 %v1094, %v1092
        %v1197 = vpack.c.b16 %v1095, %v1093
        %v1198 = vpack.c.b16 %v1098, %v1096
        %v1199 = vpack.c.b16 %v1099, %v1097
        %v1200 = vpack.c.b16 %v1102, %v1100
        %v1201 = vpack.c.b16 %v1103, %v1101
        %v1202 = vpack.c.b16 %v1106, %v1104
        %v1203 = vpack.c.b16 %v1107, %v1105
        %v1204 = vpack.c.b16 %v1110, %v1108
        %v1205 = vpack.c.b16 %v1111, %v1109
        %v1206 = vpack.c.b16 %v1114, %v1112
        %v1207 = vpack.c.b16 %v1115, %v1113
        %v1208 = vpack.c.b16 %v1118, %v1116
        %v1209 = vpack.c.b16 %v1119, %v1117
        %v1210 = vpack.c.b16 %v1122, %v1120
        %v1211 = vpack.c.b16 %v1123, %v1121
        %v1212 = vpack.c.b16 %v1126, %v1124
        %v1213 = vpack.c.b16 %v1127, %v1125
        %v1214 = vpack.c.b16 %v1130, %v1128
        %v1215 = vpack.c.b16 %v1131, %v1129
        %v1216 = vpack.c.b16 %v1134, %v1132
        %v1217 = vpack.c.b16 %v1135, %v1133
        %v1218 = vpack.c.b16 %v1138, %v1136
        %v1219 = vpack.c.b16 %v1139, %v1137
        %v1220 = vpack.c.b16 %v1142, %v1140
        %v1221 = vpack.c.b16 %v1143, %v1141
        %v1222 = vpack.c.b16 %v1146, %v1144
        %v1223 = vpack.c.b16 %v1147, %v1145
        %v1224 = vpack.c.b16 %v1150, %v1148
        %v1225 = vpack.c.b16 %v1151, %v1149
        %v1226 = vpack.c.b16 %v1154, %v1152
        %v1227 = vpack.c.b16 %v1155, %v1153
        %v1228 = vpack.c.b16 %v1158, %v1156
        %v1229 = vpack.c.b16 %v1159, %v1157
        %v1230 = vpack.c.b16 %v1162, %v1160
        %v1231 = vpack.c.b16 %v1163, %v1161
        %v1232 = vpack.c.b16 %v1166, %v1164
        %v1233 = vpack.c.b16 %v1167, %v1165
        %v1234 = vpack.c.b16 %v1170, %v1168
        %v1235 = vpack.c.b16 %v1171, %v1169
        %1300 = vmatpush.bf16.msra.mxu0 %v1186
        %1301 = vmatpush.bf16.msra.mxu0 %v1184
        %1302 = vmatpush.bf16.msra.mxu0 %v1182
        %1303 = vmatpush.bf16.msra.mxu0 %v1180
        %1304 = vmatpush.bf16.msra.mxu0 %v1178
        %1305 = vmatpush.bf16.msra.mxu0 %v1176
        %1306 = vmatpush.bf16.msra.mxu0 %v1174
        %1307 = vmatpush.bf16.msra.mxu0 %v1172
        %1308 = vmatmul.bf16.gmra.mxu0 %v878
        %v1309 = vpop.f32.mrf.mxu0
        %v1310 = vadd.f32 %v976, %v1309
        %v1311 = vpop.f32.mrf.mxu0
        %v1312 = vadd.f32 %v976, %v1311
        %1313 = vmatmul.bf16.gmra.mxu0 %v882
        %v1314 = vpop.f32.mrf.mxu0
        %v1315 = vadd.f32 %v976, %v1314
        %v1316 = vpop.f32.mrf.mxu0
        %v1317 = vadd.f32 %v976, %v1316
        %1318 = vmatmul.bf16.gmra.mxu0 %v886
        %v1319 = vpop.f32.mrf.mxu0
        %v1320 = vadd.f32 %v976, %v1319
        %v1321 = vpop.f32.mrf.mxu0
        %v1322 = vadd.f32 %v976, %v1321
        %1323 = vmatmul.bf16.gmra.mxu0 %v890
        %v1324 = vpop.f32.mrf.mxu0
        %v1325 = vadd.f32 %v976, %v1324
        %v1326 = vpop.f32.mrf.mxu0
        %v1327 = vadd.f32 %v976, %v1326
        %1328 = vmatmul.bf16.gmra.mxu0 %v894
        %v1329 = vpop.f32.mrf.mxu0
        %v1330 = vadd.f32 %v976, %v1329
        %v1331 = vpop.f32.mrf.mxu0
        %v1332 = vadd.f32 %v976, %v1331
        %1333 = vmatmul.bf16.gmra.mxu0 %v898
        %v1334 = vpop.f32.mrf.mxu0
        %v1335 = vadd.f32 %v976, %v1334
        %v1336 = vpop.f32.mrf.mxu0
        %v1337 = vadd.f32 %v976, %v1336
        %1338 = vmatmul.bf16.gmra.mxu0 %v902
        %v1339 = vpop.f32.mrf.mxu0
        %v1340 = vadd.f32 %v976, %v1339
        %v1341 = vpop.f32.mrf.mxu0
        %v1342 = vadd.f32 %v976, %v1341
        %1343 = vmatmul.bf16.gmra.mxu0 %v906
        %v1344 = vpop.f32.mrf.mxu0
        %v1345 = vadd.f32 %v976, %v1344
        %v1346 = vpop.f32.mrf.mxu0
        %v1347 = vadd.f32 %v976, %v1346
        %1348 = vdwg.mxu0
        %1349 = vmatpush.bf16.msra.mxu0 %v1202
        %1350 = vmatpush.bf16.msra.mxu0 %v1200
        %1351 = vmatpush.bf16.msra.mxu0 %v1198
        %1352 = vmatpush.bf16.msra.mxu0 %v1196
        %1353 = vmatpush.bf16.msra.mxu0 %v1194
        %1354 = vmatpush.bf16.msra.mxu0 %v1192
        %1355 = vmatpush.bf16.msra.mxu0 %v1190
        %1356 = vmatpush.bf16.msra.mxu0 %v1188
        %1357 = vmatmul.bf16.gmra.mxu0 %v879
        %v1358 = vpop.f32.mrf.mxu0
        %v1359 = vadd.f32 %v1310, %v1358
        %v1360 = vpop.f32.mrf.mxu0
        %v1361 = vadd.f32 %v1312, %v1360
        %1362 = vmatmul.bf16.gmra.mxu0 %v883
        %v1363 = vpop.f32.mrf.mxu0
        %v1364 = vadd.f32 %v1315, %v1363
        %v1365 = vpop.f32.mrf.mxu0
        %v1366 = vadd.f32 %v1317, %v1365
        %1367 = vmatmul.bf16.gmra.mxu0 %v887
        %v1368 = vpop.f32.mrf.mxu0
        %v1369 = vadd.f32 %v1320, %v1368
        %v1370 = vpop.f32.mrf.mxu0
        %v1371 = vadd.f32 %v1322, %v1370
        %1372 = vmatmul.bf16.gmra.mxu0 %v891
        %v1373 = vpop.f32.mrf.mxu0
        %v1374 = vadd.f32 %v1325, %v1373
        %v1375 = vpop.f32.mrf.mxu0
        %v1376 = vadd.f32 %v1327, %v1375
        %1377 = vmatmul.bf16.gmra.mxu0 %v895
        %v1378 = vpop.f32.mrf.mxu0
        %v1379 = vadd.f32 %v1330, %v1378
        %v1380 = vpop.f32.mrf.mxu0
        %v1381 = vadd.f32 %v1332, %v1380
        %1382 = vmatmul.bf16.gmra.mxu0 %v899
        %v1383 = vpop.f32.mrf.mxu0
        %v1384 = vadd.f32 %v1335, %v1383
        %v1385 = vpop.f32.mrf.mxu0
        %v1386 = vadd.f32 %v1337, %v1385
        %1387 = vmatmul.bf16.gmra.mxu0 %v903
        %v1388 = vpop.f32.mrf.mxu0
        %v1389 = vadd.f32 %v1340, %v1388
        %v1390 = vpop.f32.mrf.mxu0
        %v1391 = vadd.f32 %v1342, %v1390
        %1392 = vmatmul.bf16.gmra.mxu0 %v907
        %v1393 = vpop.f32.mrf.mxu0
        %v1394 = vadd.f32 %v1345, %v1393
        %v1395 = vpop.f32.mrf.mxu0
        %v1396 = vadd.f32 %v1347, %v1395
        %1397 = vdwg.mxu0
        %1398 = vmatpush.bf16.msra.mxu0 %v1218
        %1399 = vmatpush.bf16.msra.mxu0 %v1216
        %1400 = vmatpush.bf16.msra.mxu0 %v1214
        %1401 = vmatpush.bf16.msra.mxu0 %v1212
        %1402 = vmatpush.bf16.msra.mxu0 %v1210
        %1403 = vmatpush.bf16.msra.mxu0 %v1208
        %1404 = vmatpush.bf16.msra.mxu0 %v1206
        %1405 = vmatpush.bf16.msra.mxu0 %v1204
        %1406 = vmatmul.bf16.gmra.mxu0 %v880
        %v1407 = vpop.f32.mrf.mxu0
        %v1408 = vadd.f32 %v1359, %v1407
        %v1409 = vpop.f32.mrf.mxu0
        %v1410 = vadd.f32 %v1361, %v1409
        %1411 = vmatmul.bf16.gmra.mxu0 %v884
        %v1412 = vpop.f32.mrf.mxu0
        %v1413 = vadd.f32 %v1364, %v1412
        %v1414 = vpop.f32.mrf.mxu0
        %v1415 = vadd.f32 %v1366, %v1414
        %1416 = vmatmul.bf16.gmra.mxu0 %v888
        %v1417 = vpop.f32.mrf.mxu0
        %v1418 = vadd.f32 %v1369, %v1417
        %v1419 = vpop.f32.mrf.mxu0
        %v1420 = vadd.f32 %v1371, %v1419
        %1421 = vmatmul.bf16.gmra.mxu0 %v892
        %v1422 = vpop.f32.mrf.mxu0
        %v1423 = vadd.f32 %v1374, %v1422
        %v1424 = vpop.f32.mrf.mxu0
        %v1425 = vadd.f32 %v1376, %v1424
        %1426 = vmatmul.bf16.gmra.mxu0 %v896
        %v1427 = vpop.f32.mrf.mxu0
        %v1428 = vadd.f32 %v1379, %v1427
        %v1429 = vpop.f32.mrf.mxu0
        %v1430 = vadd.f32 %v1381, %v1429
        %1431 = vmatmul.bf16.gmra.mxu0 %v900
        %v1432 = vpop.f32.mrf.mxu0
        %v1433 = vadd.f32 %v1384, %v1432
        %v1434 = vpop.f32.mrf.mxu0
        %v1435 = vadd.f32 %v1386, %v1434
        %1436 = vmatmul.bf16.gmra.mxu0 %v904
        %v1437 = vpop.f32.mrf.mxu0
        %v1438 = vadd.f32 %v1389, %v1437
        %v1439 = vpop.f32.mrf.mxu0
        %v1440 = vadd.f32 %v1391, %v1439
        %1441 = vmatmul.bf16.gmra.mxu0 %v908
        %v1442 = vpop.f32.mrf.mxu0
        %v1443 = vadd.f32 %v1394, %v1442
        %v1444 = vpop.f32.mrf.mxu0
        %v1445 = vadd.f32 %v1396, %v1444
        %1446 = vdwg.mxu0
        %1447 = vmatpush.bf16.msra.mxu0 %v1234
        %1448 = vmatpush.bf16.msra.mxu0 %v1232
        %1449 = vmatpush.bf16.msra.mxu0 %v1230
        %1450 = vmatpush.bf16.msra.mxu0 %v1228
        %1451 = vmatpush.bf16.msra.mxu0 %v1226
        %1452 = vmatpush.bf16.msra.mxu0 %v1224
        %1453 = vmatpush.bf16.msra.mxu0 %v1222
        %1454 = vmatpush.bf16.msra.mxu0 %v1220
        %1455 = vmatmul.bf16.gmra.mxu0 %v881
        %v1456 = vpop.f32.mrf.mxu0
        %v1457 = vadd.f32 %v1408, %v1456
        %v1458 = vpop.f32.mrf.mxu0
        %v1459 = vadd.f32 %v1410, %v1458
        %1460 = vmatmul.bf16.gmra.mxu0 %v885
        %v1461 = vpop.f32.mrf.mxu0
        %v1462 = vadd.f32 %v1413, %v1461
        %v1463 = vpop.f32.mrf.mxu0
        %v1464 = vadd.f32 %v1415, %v1463
        %1465 = vmatmul.bf16.gmra.mxu0 %v889
        %v1466 = vpop.f32.mrf.mxu0
        %v1467 = vadd.f32 %v1418, %v1466
        %v1468 = vpop.f32.mrf.mxu0
        %v1469 = vadd.f32 %v1420, %v1468
        %1470 = vmatmul.bf16.gmra.mxu0 %v893
        %v1471 = vpop.f32.mrf.mxu0
        %v1472 = vadd.f32 %v1423, %v1471
        %v1473 = vpop.f32.mrf.mxu0
        %v1474 = vadd.f32 %v1425, %v1473
        %1475 = vmatmul.bf16.gmra.mxu0 %v897
        %v1476 = vpop.f32.mrf.mxu0
        %v1477 = vadd.f32 %v1428, %v1476
        %v1478 = vpop.f32.mrf.mxu0
        %v1479 = vadd.f32 %v1430, %v1478
        %1480 = vmatmul.bf16.gmra.mxu0 %v901
        %v1481 = vpop.f32.mrf.mxu0
        %v1482 = vadd.f32 %v1433, %v1481
        %v1483 = vpop.f32.mrf.mxu0
        %v1484 = vadd.f32 %v1435, %v1483
        %1485 = vmatmul.bf16.gmra.mxu0 %v905
        %v1486 = vpop.f32.mrf.mxu0
        %v1487 = vadd.f32 %v1438, %v1486
        %v1488 = vpop.f32.mrf.mxu0
        %v1489 = vadd.f32 %v1440, %v1488
        %1490 = vmatmul.bf16.gmra.mxu0 %v909
        %v1491 = vpop.f32.mrf.mxu0
        %v1492 = vadd.f32 %v1443, %v1491
        %v1493 = vpop.f32.mrf.mxu0
        %v1494 = vadd.f32 %v1445, %v1493
        %1495 = vdwg.mxu0
        %1496 = vmatpush.bf16.msra.mxu0 %v1187
        %1497 = vmatpush.bf16.msra.mxu0 %v1185
        %1498 = vmatpush.bf16.msra.mxu0 %v1183
        %1499 = vmatpush.bf16.msra.mxu0 %v1181
        %1500 = vmatpush.bf16.msra.mxu0 %v1179
        %1501 = vmatpush.bf16.msra.mxu0 %v1177
        %1502 = vmatpush.bf16.msra.mxu0 %v1175
        %1503 = vmatpush.bf16.msra.mxu0 %v1173
        %1504 = vmatmul.bf16.gmra.mxu0 %v878
        %v1505 = vpop.f32.mrf.mxu0
        %v1506 = vadd.f32 %v977, %v1505
        %v1507 = vpop.f32.mrf.mxu0
        %v1508 = vadd.f32 %v977, %v1507
        %1509 = vmatmul.bf16.gmra.mxu0 %v882
        %v1510 = vpop.f32.mrf.mxu0
        %v1511 = vadd.f32 %v977, %v1510
        %v1512 = vpop.f32.mrf.mxu0
        %v1513 = vadd.f32 %v977, %v1512
        %1514 = vmatmul.bf16.gmra.mxu0 %v886
        %v1515 = vpop.f32.mrf.mxu0
        %v1516 = vadd.f32 %v977, %v1515
        %v1517 = vpop.f32.mrf.mxu0
        %v1518 = vadd.f32 %v977, %v1517
        %1519 = vmatmul.bf16.gmra.mxu0 %v890
        %v1520 = vpop.f32.mrf.mxu0
        %v1521 = vadd.f32 %v977, %v1520
        %v1522 = vpop.f32.mrf.mxu0
        %v1523 = vadd.f32 %v977, %v1522
        %1524 = vmatmul.bf16.gmra.mxu0 %v894
        %v1525 = vpop.f32.mrf.mxu0
        %v1526 = vadd.f32 %v977, %v1525
        %v1527 = vpop.f32.mrf.mxu0
        %v1528 = vadd.f32 %v977, %v1527
        %1529 = vmatmul.bf16.gmra.mxu0 %v898
        %v1530 = vpop.f32.mrf.mxu0
        %v1531 = vadd.f32 %v977, %v1530
        %v1532 = vpop.f32.mrf.mxu0
        %v1533 = vadd.f32 %v977, %v1532
        %1534 = vmatmul.bf16.gmra.mxu0 %v902
        %v1535 = vpop.f32.mrf.mxu0
        %v1536 = vadd.f32 %v977, %v1535
        %v1537 = vpop.f32.mrf.mxu0
        %v1538 = vadd.f32 %v977, %v1537
        %1539 = vmatmul.bf16.gmra.mxu0 %v906
        %v1540 = vpop.f32.mrf.mxu0
        %v1541 = vadd.f32 %v977, %v1540
        %v1542 = vpop.f32.mrf.mxu0
        %v1543 = vadd.f32 %v977, %v1542
        %1544 = vdwg.mxu0
        %1545 = vmatpush.bf16.msra.mxu0 %v1203
        %1546 = vmatpush.bf16.msra.mxu0 %v1201
        %1547 = vmatpush.bf16.msra.mxu0 %v1199
        %1548 = vmatpush.bf16.msra.mxu0 %v1197
        %1549 = vmatpush.bf16.msra.mxu0 %v1195
        %1550 = vmatpush.bf16.msra.mxu0 %v1193
        %1551 = vmatpush.bf16.msra.mxu0 %v1191
        %1552 = vmatpush.bf16.msra.mxu0 %v1189
        %1553 = vmatmul.bf16.gmra.mxu0 %v879
        %v1554 = vpop.f32.mrf.mxu0
        %v1555 = vadd.f32 %v1506, %v1554
        %v1556 = vpop.f32.mrf.mxu0
        %v1557 = vadd.f32 %v1508, %v1556
        %1558 = vmatmul.bf16.gmra.mxu0 %v883
        %v1559 = vpop.f32.mrf.mxu0
        %v1560 = vadd.f32 %v1511, %v1559
        %v1561 = vpop.f32.mrf.mxu0
        %v1562 = vadd.f32 %v1513, %v1561
        %1563 = vmatmul.bf16.gmra.mxu0 %v887
        %v1564 = vpop.f32.mrf.mxu0
        %v1565 = vadd.f32 %v1516, %v1564
        %v1566 = vpop.f32.mrf.mxu0
        %v1567 = vadd.f32 %v1518, %v1566
        %1568 = vmatmul.bf16.gmra.mxu0 %v891
        %v1569 = vpop.f32.mrf.mxu0
        %v1570 = vadd.f32 %v1521, %v1569
        %v1571 = vpop.f32.mrf.mxu0
        %v1572 = vadd.f32 %v1523, %v1571
        %1573 = vmatmul.bf16.gmra.mxu0 %v895
        %v1574 = vpop.f32.mrf.mxu0
        %v1575 = vadd.f32 %v1526, %v1574
        %v1576 = vpop.f32.mrf.mxu0
        %v1577 = vadd.f32 %v1528, %v1576
        %1578 = vmatmul.bf16.gmra.mxu0 %v899
        %v1579 = vpop.f32.mrf.mxu0
        %v1580 = vadd.f32 %v1531, %v1579
        %v1581 = vpop.f32.mrf.mxu0
        %v1582 = vadd.f32 %v1533, %v1581
        %1583 = vmatmul.bf16.gmra.mxu0 %v903
        %v1584 = vpop.f32.mrf.mxu0
        %v1585 = vadd.f32 %v1536, %v1584
        %v1586 = vpop.f32.mrf.mxu0
        %v1587 = vadd.f32 %v1538, %v1586
        %1588 = vmatmul.bf16.gmra.mxu0 %v907
        %v1589 = vpop.f32.mrf.mxu0
        %v1590 = vadd.f32 %v1541, %v1589
        %v1591 = vpop.f32.mrf.mxu0
        %v1592 = vadd.f32 %v1543, %v1591
        %1593 = vdwg.mxu0
        %1594 = vmatpush.bf16.msra.mxu0 %v1219
        %1595 = vmatpush.bf16.msra.mxu0 %v1217
        %1596 = vmatpush.bf16.msra.mxu0 %v1215
        %1597 = vmatpush.bf16.msra.mxu0 %v1213
        %1598 = vmatpush.bf16.msra.mxu0 %v1211
        %1599 = vmatpush.bf16.msra.mxu0 %v1209
        %1600 = vmatpush.bf16.msra.mxu0 %v1207
        %1601 = vmatpush.bf16.msra.mxu0 %v1205
        %1602 = vmatmul.bf16.gmra.mxu0 %v880
        %v1603 = vpop.f32.mrf.mxu0
        %v1604 = vadd.f32 %v1555, %v1603
        %v1605 = vpop.f32.mrf.mxu0
        %v1606 = vadd.f32 %v1557, %v1605
        %1607 = vmatmul.bf16.gmra.mxu0 %v884
        %v1608 = vpop.f32.mrf.mxu0
        %v1609 = vadd.f32 %v1560, %v1608
        %v1610 = vpop.f32.mrf.mxu0
        %v1611 = vadd.f32 %v1562, %v1610
        %1612 = vmatmul.bf16.gmra.mxu0 %v888
        %v1613 = vpop.f32.mrf.mxu0
        %v1614 = vadd.f32 %v1565, %v1613
        %v1615 = vpop.f32.mrf.mxu0
        %v1616 = vadd.f32 %v1567, %v1615
        %1617 = vmatmul.bf16.gmra.mxu0 %v892
        %v1618 = vpop.f32.mrf.mxu0
        %v1619 = vadd.f32 %v1570, %v1618
        %v1620 = vpop.f32.mrf.mxu0
        %v1621 = vadd.f32 %v1572, %v1620
        %1622 = vmatmul.bf16.gmra.mxu0 %v896
        %v1623 = vpop.f32.mrf.mxu0
        %v1624 = vadd.f32 %v1575, %v1623
        %v1625 = vpop.f32.mrf.mxu0
        %v1626 = vadd.f32 %v1577, %v1625
        %1627 = vmatmul.bf16.gmra.mxu0 %v900
        %v1628 = vpop.f32.mrf.mxu0
        %v1629 = vadd.f32 %v1580, %v1628
        %v1630 = vpop.f32.mrf.mxu0
        %v1631 = vadd.f32 %v1582, %v1630
        %1632 = vmatmul.bf16.gmra.mxu0 %v904
        %v1633 = vpop.f32.mrf.mxu0
        %v1634 = vadd.f32 %v1585, %v1633
        %v1635 = vpop.f32.mrf.mxu0
        %v1636 = vadd.f32 %v1587, %v1635
        %1637 = vmatmul.bf16.gmra.mxu0 %v908
        %v1638 = vpop.f32.mrf.mxu0
        %v1639 = vadd.f32 %v1590, %v1638
        %v1640 = vpop.f32.mrf.mxu0
        %v1641 = vadd.f32 %v1592, %v1640
        %1642 = vdwg.mxu0
        %1643 = vmatpush.bf16.msra.mxu0 %v1235
        %1644 = vmatpush.bf16.msra.mxu0 %v1233
        %1645 = vmatpush.bf16.msra.mxu0 %v1231
        %1646 = vmatpush.bf16.msra.mxu0 %v1229
        %1647 = vmatpush.bf16.msra.mxu0 %v1227
        %1648 = vmatpush.bf16.msra.mxu0 %v1225
        %1649 = vmatpush.bf16.msra.mxu0 %v1223
        %1650 = vmatpush.bf16.msra.mxu0 %v1221
        %1651 = vmatmul.bf16.gmra.mxu0 %v881
        %v1652 = vpop.f32.mrf.mxu0
        %v1653 = vadd.f32 %v1604, %v1652
        %v1654 = vpop.f32.mrf.mxu0
        %v1655 = vadd.f32 %v1606, %v1654
        %1656 = vmatmul.bf16.gmra.mxu0 %v885
        %v1657 = vpop.f32.mrf.mxu0
        %v1658 = vadd.f32 %v1609, %v1657
        %v1659 = vpop.f32.mrf.mxu0
        %v1660 = vadd.f32 %v1611, %v1659
        %1661 = vmatmul.bf16.gmra.mxu0 %v889
        %v1662 = vpop.f32.mrf.mxu0
        %v1663 = vadd.f32 %v1614, %v1662
        %v1664 = vpop.f32.mrf.mxu0
        %v1665 = vadd.f32 %v1616, %v1664
        %1666 = vmatmul.bf16.gmra.mxu0 %v893
        %v1667 = vpop.f32.mrf.mxu0
        %v1668 = vadd.f32 %v1619, %v1667
        %v1669 = vpop.f32.mrf.mxu0
        %v1670 = vadd.f32 %v1621, %v1669
        %1671 = vmatmul.bf16.gmra.mxu0 %v897
        %v1672 = vpop.f32.mrf.mxu0
        %v1673 = vadd.f32 %v1624, %v1672
        %v1674 = vpop.f32.mrf.mxu0
        %v1675 = vadd.f32 %v1626, %v1674
        %1676 = vmatmul.bf16.gmra.mxu0 %v901
        %v1677 = vpop.f32.mrf.mxu0
        %v1678 = vadd.f32 %v1629, %v1677
        %v1679 = vpop.f32.mrf.mxu0
        %v1680 = vadd.f32 %v1631, %v1679
        %1681 = vmatmul.bf16.gmra.mxu0 %v905
        %v1682 = vpop.f32.mrf.mxu0
        %v1683 = vadd.f32 %v1634, %v1682
        %v1684 = vpop.f32.mrf.mxu0
        %v1685 = vadd.f32 %v1636, %v1684
        %1686 = vmatmul.bf16.gmra.mxu0 %v909
        %v1687 = vpop.f32.mrf.mxu0
        %v1688 = vadd.f32 %v1639, %v1687
        %v1689 = vpop.f32.mrf.mxu0
        %v1690 = vadd.f32 %v1641, %v1689
        %1691 = vdwg.mxu0
        %v1692 = vmax.f32 %v1457, 0.0
        %v1693 = vmax.f32 %v1653, 0.0
        %v1694 = vmax.f32 %v1459, 0.0
        %v1695 = vmax.f32 %v1655, 0.0
        %v1696 = vmax.f32 %v1462, 0.0
        %v1697 = vmax.f32 %v1658, 0.0
        %v1698 = vmax.f32 %v1464, 0.0
        %v1699 = vmax.f32 %v1660, 0.0
        %v1700 = vmax.f32 %v1467, 0.0
        %v1701 = vmax.f32 %v1663, 0.0
        %v1702 = vmax.f32 %v1469, 0.0
        %v1703 = vmax.f32 %v1665, 0.0
        %v1704 = vmax.f32 %v1472, 0.0
        %v1705 = vmax.f32 %v1668, 0.0
        %v1706 = vmax.f32 %v1474, 0.0
        %v1707 = vmax.f32 %v1670, 0.0
        %v1708 = vmax.f32 %v1477, 0.0
        %v1709 = vmax.f32 %v1673, 0.0
        %v1710 = vmax.f32 %v1479, 0.0
        %v1711 = vmax.f32 %v1675, 0.0
        %v1712 = vmax.f32 %v1482, 0.0
        %v1713 = vmax.f32 %v1678, 0.0
        %v1714 = vmax.f32 %v1484, 0.0
        %v1715 = vmax.f32 %v1680, 0.0
        %v1716 = vmax.f32 %v1487, 0.0
        %v1717 = vmax.f32 %v1683, 0.0
        %v1718 = vmax.f32 %v1489, 0.0
        %v1719 = vmax.f32 %v1685, 0.0
        %v1720 = vmax.f32 %v1492, 0.0
        %v1721 = vmax.f32 %v1688, 0.0
        %v1722 = vmax.f32 %v1494, 0.0
        %v1723 = vmax.f32 %v1690, 0.0
        %v1724 = vld [vmem:[%s5] sm:$0x3]
        %v1726 = vperm.slane %v1724, 0
        %v1727 = vperm.slane %v1724, 1
        %v1730 = vmul.f32 %v1692, %v1726
        %v1731 = vmul.f32 %v1693, %v1727
        %v1732 = vmul.f32 %v1694, %v1726
        %v1733 = vmul.f32 %v1695, %v1727
        %v1734 = vmul.f32 %v1696, %v1726
        %v1735 = vmul.f32 %v1697, %v1727
        %v1736 = vmul.f32 %v1698, %v1726
        %v1737 = vmul.f32 %v1699, %v1727
        %v1738 = vmul.f32 %v1700, %v1726
        %v1739 = vmul.f32 %v1701, %v1727
        %v1740 = vmul.f32 %v1702, %v1726
        %v1741 = vmul.f32 %v1703, %v1727
        %v1742 = vmul.f32 %v1704, %v1726
        %v1743 = vmul.f32 %v1705, %v1727
        %v1744 = vmul.f32 %v1706, %v1726
        %v1745 = vmul.f32 %v1707, %v1727
        %v1746 = vmul.f32 %v1708, %v1726
        %v1747 = vmul.f32 %v1709, %v1727
        %v1748 = vmul.f32 %v1710, %v1726
        %v1749 = vmul.f32 %v1711, %v1727
        %v1750 = vmul.f32 %v1712, %v1726
        %v1751 = vmul.f32 %v1713, %v1727
        %v1752 = vmul.f32 %v1714, %v1726
        %v1753 = vmul.f32 %v1715, %v1727
        %v1754 = vmul.f32 %v1716, %v1726
        %v1755 = vmul.f32 %v1717, %v1727
        %v1756 = vmul.f32 %v1718, %v1726
        %v1757 = vmul.f32 %v1719, %v1727
        %v1758 = vmul.f32 %v1720, %v1726
        %v1759 = vmul.f32 %v1721, %v1727
        %v1760 = vmul.f32 %v1722, %v1726
        %v1761 = vmul.f32 %v1723, %v1727
        %v1762 = vadd.f32 %v1730, %v1731
        %1763 = vadd.xlane.f32.xlu0 %v1762
        %v1764 = vpop.xlane.xlu0 %1763
        %v1765 = vadd.f32 %v1732, %v1733
        %1766 = vadd.xlane.f32.xlu0 %v1765
        %v1767 = vpop.xlane.xlu0 %1766
        %v1768 = vadd.f32 %v1734, %v1735
        %1769 = vadd.xlane.f32.xlu0 %v1768
        %v1770 = vpop.xlane.xlu0 %1769
        %v1771 = vadd.f32 %v1736, %v1737
        %1772 = vadd.xlane.f32.xlu0 %v1771
        %v1773 = vpop.xlane.xlu0 %1772
        %v1774 = vadd.f32 %v1738, %v1739
        %1775 = vadd.xlane.f32.xlu0 %v1774
        %v1776 = vpop.xlane.xlu0 %1775
        %v1777 = vadd.f32 %v1740, %v1741
        %1778 = vadd.xlane.f32.xlu0 %v1777
        %v1779 = vpop.xlane.xlu0 %1778
        %v1780 = vadd.f32 %v1742, %v1743
        %1781 = vadd.xlane.f32.xlu0 %v1780
        %v1782 = vpop.xlane.xlu0 %1781
        %v1783 = vadd.f32 %v1744, %v1745
        %1784 = vadd.xlane.f32.xlu0 %v1783
        %v1785 = vpop.xlane.xlu0 %1784
        %v1786 = vadd.f32 %v1746, %v1747
        %1787 = vadd.xlane.f32.xlu0 %v1786
        %v1788 = vpop.xlane.xlu0 %1787
        %v1789 = vadd.f32 %v1748, %v1749
        %1790 = vadd.xlane.f32.xlu0 %v1789
        %v1791 = vpop.xlane.xlu0 %1790
        %v1792 = vadd.f32 %v1750, %v1751
        %1793 = vadd.xlane.f32.xlu0 %v1792
        %v1794 = vpop.xlane.xlu0 %1793
        %v1795 = vadd.f32 %v1752, %v1753
        %1796 = vadd.xlane.f32.xlu0 %v1795
        %v1797 = vpop.xlane.xlu0 %1796
        %v1798 = vadd.f32 %v1754, %v1755
        %1799 = vadd.xlane.f32.xlu0 %v1798
        %v1800 = vpop.xlane.xlu0 %1799
        %v1801 = vadd.f32 %v1756, %v1757
        %1802 = vadd.xlane.f32.xlu0 %v1801
        %v1803 = vpop.xlane.xlu0 %1802
        %v1804 = vadd.f32 %v1758, %v1759
        %1805 = vadd.xlane.f32.xlu0 %v1804
        %v1806 = vpop.xlane.xlu0 %1805
        %v1807 = vadd.f32 %v1760, %v1761
        %1808 = vadd.xlane.f32.xlu0 %v1807
        %v1809 = vpop.xlane.xlu0 %1808
        %s1810 = sld [smem:[#allocation2]]
        %v1811 = vstv %s1810
        %v1812 = vadd.f32 %v1764, %v1811
        %v1813 = vadd.f32 %v1767, %v1811
        %v1814 = vadd.f32 %v1770, %v1811
        %v1815 = vadd.f32 %v1773, %v1811
        %v1816 = vadd.f32 %v1776, %v1811
        %v1817 = vadd.f32 %v1779, %v1811
        %v1818 = vadd.f32 %v1782, %v1811
        %v1819 = vadd.f32 %v1785, %v1811
        %v1820 = vadd.f32 %v1788, %v1811
        %v1821 = vadd.f32 %v1791, %v1811
        %v1822 = vadd.f32 %v1794, %v1811
        %v1823 = vadd.f32 %v1797, %v1811
        %v1824 = vadd.f32 %v1800, %v1811
        %v1825 = vadd.f32 %v1803, %v1811
        %v1826 = vadd.f32 %v1806, %v1811
        %v1827 = vadd.f32 %v1809, %v1811
        %vm1828 = vcmask 7168
        %1829 = vst.msk [vmem:[%s350] sm:$0xff] %vm1828, %v1812
        %1830 = vst.msk [vmem:[%s350 + $0x8] sm:$0xff] %vm1828, %v1813
        %1831 = vst.msk [vmem:[%s350 + $0x10] sm:$0xff] %vm1828, %v1814
        %1832 = vst.msk [vmem:[%s350 + $0x18] sm:$0xff] %vm1828, %v1815
        %1833 = vst.msk [vmem:[%s350 + $0x20] sm:$0xff] %vm1828, %v1816
        %1834 = vst.msk [vmem:[%s350 + $0x28] sm:$0xff] %vm1828, %v1817
        %1835 = vst.msk [vmem:[%s350 + $0x30] sm:$0xff] %vm1828, %v1818
        %1836 = vst.msk [vmem:[%s350 + $0x38] sm:$0xff] %vm1828, %v1819
        %1837 = vst.msk [vmem:[%s350 + $0x40] sm:$0xff] %vm1828, %v1820
        %1838 = vst.msk [vmem:[%s350 + $0x48] sm:$0xff] %vm1828, %v1821
        %1839 = vst.msk [vmem:[%s350 + $0x50] sm:$0xff] %vm1828, %v1822
        %1840 = vst.msk [vmem:[%s350 + $0x58] sm:$0xff] %vm1828, %v1823
        %1841 = vst.msk [vmem:[%s350 + $0x60] sm:$0xff] %vm1828, %v1824
        %1842 = vst.msk [vmem:[%s350 + $0x68] sm:$0xff] %vm1828, %v1825
        %1843 = vst.msk [vmem:[%s350 + $0x70] sm:$0xff] %vm1828, %v1826
        %1844 = vst.msk [vmem:[%s350 + $0x78] sm:$0xff] %vm1828, %v1827
        %s1845 = smul.u32 16, %s24
        %p1846 = scmp.lt.s32.totalorder %s1845, 31
        %s1847 = scalar_select %p1846, %s1845, 31
        %s1848 = smul.addr %s1847, 8
        %s1849 = scalar_lea.vmem %s7, %s1848
        // Predicated region
        $region65: #{tpu_custom_call.1} parent=47 // pred_check
          %p1850 = pneg %p194
        $region66: #{tpu_custom_call.1} parent=47 // pred_check_branch
          %1852 = sbr.rel (%p1850) target = $region68
        $region67: #{tpu_custom_call.1} parent=47 // pred_region
          %s1853 = smul.u32 16, %s24
        $region68: #{tpu_custom_call.1} parent=47 // pred_fallthru
          _
      $region48: #{tpu_custom_call.1} parent=5 // pred_fallthru
        _
      %p1854 = scmp.le.s32.totalorder 2, %s19
      // Predicated region
      $region69: #{tpu_custom_call.1} parent=5 // pred_check
        %p1855 = pneg %p1854
      $region70: #{tpu_custom_call.1} parent=5 // pred_check_branch
        %1857 = sbr.rel (%p1855) target = $region72
      $region71: #{tpu_custom_call.1} parent=5 // pred_region
        %s1858 = ssub.s32 %s19, 2
        // Predicated region
        $region73: #{tpu_custom_call.1} parent=71 // pred_check
          %p1859 = pneg %p200
        $region74: #{tpu_custom_call.1} parent=71 // pred_check_branch
          %1861 = sbr.rel (%p1859) target = $region76
        $region75: #{tpu_custom_call.1} parent=71 // pred_region
          %s1862 = smul.u32 16, %s25
          %p1863 = scmp.lt.s32.totalorder %s1862, 31
          %s1864 = scalar_select %p1863, %s1862, 31
          %s1865 = smul.addr %s1864, 8
          %s1866 = scalar_lea.vmem %s7, %s1865
        $region76: #{tpu_custom_call.1} parent=71 // pred_fallthru
          _
      $region72: #{tpu_custom_call.1} parent=5 // pred_fallthru
        _
    $region6: #{tpu_custom_call.1} parent=1 // loop_footer
      %s23 = sadd.s32 1, %s19
    $region7: #{tpu_custom_call.1} parent=1 // loop_footer_branch
      %18 = sbr.rel target = $region3
    $region8: #{tpu_custom_call.1} parent=1 // loop_exit
      _
    %1867 = vsyncpa [#allocation4], 1
    %s1868 = scalar_lea.sflag [#allocation4], 1
    %1869 = vsyncpa %s1868, 1
    %1870 = vsyncpa [#allocation6], 1
    %1871 = vsyncpa [#allocation9], 1

</llo_original>
